<compile_context>
chip_gen: v6e
topology: v6e:2x2x1
jax: 0.10.0
libtpu: 0.0.40
codegen_flags: <defaults>
</compile_context>

<pallas_src>
import functools

import numpy as np
import jax
import jax.numpy as jnp
from jax import lax
from jax.experimental import pallas as pl
from jax.experimental.pallas import tpu as pltpu

KSIZE = 7
PAD = 3


def _sigmoid(z):
    # exp runs on the EUP; the exact-divide volume is tiny ((TB,C) + (TB,HW)),
    # so keep it exact rather than using the approx reciprocal.
    return 1.0 / (1.0 + jnp.exp(-z))


def sse_attention_kernel(x_ref, p_ref, cm_ref, o_ref, *, C, Cr):
    xb = x_ref[...].astype(jnp.float32)                    # (TB, C, HW)

    # ---------------- SELayer (channel attention), batched over TB ----------
    s = jnp.mean(xb, axis=2)                               # (TB, C)  squeeze
    # fc1 -> relu -> fc2 (+biases), unrolled over the Cr (= C//8) reduced
    # channels: pure VPU broadcast-mul + XLU lane reduce — no MXU round trips
    # for these >98%-padding matmuls.
    z = p_ref[2 * Cr + 1:2 * Cr + 2, 0:C]                  # (1, C)   fc2 bias
    for r in range(Cr):
        w1_r = p_ref[r:r + 1, 0:C]                         # (1, C)   w1[:, r]
        b1_r = p_ref[Cr:Cr + 1, r:r + 1]                   # (1, 1)   b1[r]
        h_r = jnp.maximum(
            jnp.sum(s * w1_r, axis=1, keepdims=True) + b1_r, 0.0)   # (TB, 1)
        w2_r = p_ref[Cr + 1 + r:Cr + 2 + r, 0:C]           # (1, C)   w2[r, :]
        z = z + h_r * w2_r                                 # (TB, C)
    g = _sigmoid(z)                                        # (TB, C)  channel gate
    out1 = xb * g[:, :, None] * xb                         # SELayer(x) * x

    # ---------------- SpatialAttention --------------------------------------
    avg = jnp.mean(out1, axis=1)                           # (TB, HW)
    mx = jnp.max(out1, axis=1)                             # (TB, HW)
    cat = jnp.concatenate([avg, mx], axis=1).astype(cm_ref.dtype)   # (TB, 2*HW)
    # 7x7 zero-padded cross-correlation == one MXU matmul against the folded
    # dense matrix (bf16 operands, f32 accumulation).
    conv = jnp.dot(cat, cm_ref[...], preferred_element_type=jnp.float32)
    sgate = _sigmoid(conv)                                 # (TB, HW) spatial gate

    o_ref[...] = (out1 * sgate[:, None, :]).astype(o_ref.dtype)


def build_conv_matrix(convw, H, W, dtype=jnp.bfloat16):
    """Fold the (1, 2, 7, 7) conv weight into a single (2*H*W, H*W) matrix M
    such that conv2d(cat([avg, mx]), convw, padding=3), flattened, equals
    concat([avg, mx], axis=-1) @ M  (exact zero-padded cross-correlation)."""
    K = np.asarray(convw, np.float32)[0]                   # (2, 7, 7)
    HW = H * W
    M = np.zeros((2, H, W, H, W), np.float32)              # (c, y_in, x_in, y_out, x_out)
    for c in range(2):
        for ky in range(KSIZE):
            for kx in range(KSIZE):
                dy, dx = ky - PAD, kx - PAD
                yo = np.arange(max(0, -dy), min(H, H - dy))
                xo = np.arange(max(0, -dx), min(W, W - dx))
                if yo.size == 0 or xo.size == 0:
                    continue
                M[c, yo[:, None] + dy, xo[None, :] + dx,
                  yo[:, None], xo[None, :]] = K[c, ky, kx]
    return jnp.asarray(M.reshape(2 * HW, HW), dtype)


def pack_se_params(w1, b1, w2, b2):
    """Pack fc1/fc2 weights+biases into one padded (>=8, >=128) f32 tile so the
    kernel issues a single constant-index DMA.  Row layout:
      [0 : Cr)          w1.T rows   (w1[:, r] per row)
      [Cr]              b1          (cols 0..Cr)
      [Cr+1 : 2Cr+1)    w2 rows     (w2[r, :] per row)
      [2Cr+1]           b2          (cols 0..C)
    """
    C, Cr = w1.shape
    rows = 2 * Cr + 2
    R = ((rows + 7) // 8) * 8
    L = ((max(C, Cr) + 127) // 128) * 128
    p = jnp.zeros((R, L), jnp.float32)
    p = p.at[0:Cr, 0:C].set(jnp.asarray(w1, jnp.float32).T)
    p = p.at[Cr, 0:Cr].set(jnp.asarray(b1, jnp.float32).reshape(-1))
    p = p.at[Cr + 1:2 * Cr + 1, 0:C].set(jnp.asarray(w2, jnp.float32))
    p = p.at[2 * Cr + 1, 0:C].set(jnp.asarray(b2, jnp.float32).reshape(-1))
    return p


def _vmem_budget_bytes():
    # Generation-aware ceiling: half of physical VMEM, capped at 32 MiB.  Safe
    # on v5e/v6e (128 MiB per core) and v7x (64 MiB per TensorCore).
    try:
        cap = int(pltpu.get_tpu_info().vmem_capacity_bytes)
    except Exception:
        cap = 64 << 20          # assume the smallest (v7x) VMEM if query fails
    return min(cap // 2, 32 << 20)


def _pick_tb(B, C, HW, cm_bytes, p_bytes, budget):
    """Largest batch tile (divisor of B) fitting the VMEM budget.  We *want*
    grid=(1,) whenever it fits: on single-TC v5e/v6e extra grid steps are pure
    serial overhead, and on v7x tb=B is the safe fallback when the batch axis
    would not actually shard across the two TensorCores."""
    fixed = 2 * (cm_bytes + p_bytes)                # double-buffered constants
    # Per image: f32 in/out tiles (double-buffered) + live f32 intermediates
    # (xb, out1, gated output) — conservative 7x the raw image size.
    per_img = C * HW * 4 * 7
    tb = int(max(1, min(B, (budget - fixed) // per_img)))
    while tb > 1 and B % tb != 0:
        tb -= 1
    return tb


def sse_attention(x, w1, b1, w2, b2, convw, *, tb=None, conv_dtype=jnp.bfloat16):
    """x: (B, C, H, W) f32.  w1 = fc1.weight.T (C, C//8), b1 (1, C//8),
    w2 = fc2.weight.T (C//8, C), b2 (1, C), convw (1, 2, 7, 7)."""
    B, C, H, W = x.shape
    Cr = w1.shape[1]
    HW = H * W

    cm = build_conv_matrix(convw, H, W, conv_dtype)        # (2*HW, HW)
    params = pack_se_params(w1, b1, w2, b2)                # (>=8, >=128) f32
    cm_bytes = cm.size * cm.dtype.itemsize
    p_bytes = params.size * params.dtype.itemsize
    budget = _vmem_budget_bytes()

    # TODO(synk): for large H*W the dense (2*HW, HW) fold outgrows VMEM
    # (HW=2048 -> 16 MiB bf16); switch to a shifted pltpu.roll / banded-matmul
    # conv path there.  Guard explicitly instead of silently overflowing.
    assert 2 * (cm_bytes + p_bytes) + C * HW * 4 * 7 <= budget, (
        "spatial size too large for the dense conv-matrix path")

    if tb is None:
        tb = _pick_tb(B, C, HW, cm_bytes, p_bytes, budget)
    assert B % tb == 0, (B, tb)

    x_flat = x.reshape(B, C, HW)                           # lane-dense, free reshape
    kernel = functools.partial(sse_attention_kernel, C=C, Cr=Cr)

    out_flat = pl.pallas_call(
        kernel,
        out_shape=jax.ShapeDtypeStruct((B, C, HW), x.dtype),
        grid=(B // tb,),
        in_specs=[
            pl.BlockSpec((tb, C, HW), lambda b: (b, 0, 0)),
            pl.BlockSpec(params.shape, lambda b: (0, 0)),
            pl.BlockSpec(cm.shape, lambda b: (0, 0)),
        ],
        out_specs=pl.BlockSpec((tb, C, HW), lambda b: (b, 0, 0)),
        compiler_params=pltpu.CompilerParams(
            dimension_semantics=("parallel",),
            vmem_limit_bytes=budget + (8 << 20)),
    )(x_flat, params, cm)
    return out_flat.reshape(B, C, H, W)


def sse_attention_ref(x, w1, b1, w2, b2, convw):
    """Pure-JAX f32 reference mirroring the PyTorch forward."""
    B, C, H, W = x.shape
    s = x.reshape(B, C, -1).mean(axis=2)                   # (B, C)
    h = jnp.maximum(s @ w1 + b1, 0.0)
    g = _sigmoid(h @ w2 + b2)                              # (B, C)
    out1 = x * g[:, :, None, None] * x                     # SELayer(x) * x
    avg = out1.mean(axis=1, keepdims=True)
    mx = out1.max(axis=1, keepdims=True)
    cat = jnp.concatenate([avg, mx], axis=1)               # (B, 2, H, W)
    conv = lax.conv_general_dilated(
        cat, convw, window_strides=(1, 1),
        padding=[(PAD, PAD), (PAD, PAD)],
        dimension_numbers=("NCHW", "OIHW", "NCHW"))
    return _sigmoid(conv) * out1


if __name__ == "__main__":
    key = jax.random.PRNGKey(0)
    kx, k1, k2, k3, k4, k5 = jax.random.split(key, 6)

    B, C, H, W = 8, 16, 16, 16            # channel=16, SELayer reduction=8 -> Cr=2
    Cr = C // 8

    x = jax.random.normal(kx, (B, C, H, W), jnp.float32)
    # Deterministic synthetic parameters (shapes from the module's __init__).
    w1 = jax.random.normal(k1, (C, Cr), jnp.float32) * 0.25      # fc1.weight.T
    b1 = jax.random.normal(k2, (1, Cr), jnp.float32) * 0.1       # fc1.bias
    w2 = jax.random.normal(k3, (Cr, C), jnp.float32) * 0.25      # fc2.weight.T
    b2 = jax.random.normal(k4, (1, C), jnp.float32) * 0.1        # fc2.bias
    convw = jax.random.normal(k5, (1, 2, KSIZE, KSIZE), jnp.float32) * 0.05

    out = jax.block_until_ready(sse_attention(x, w1, b1, w2, b2, convw))

    ref = sse_attention_ref(x, w1, b1, w2, b2, convw)
    assert out.shape == ref.shape
    # Tolerance reflects the bf16 conv-matmul operands (accumulation stays f32;
    # the f32 reference conv is exact); the SE path is pure f32.
    if not jnp.allclose(out, ref, rtol=2e-2, atol=2e-2):
        raise AssertionError(
            f"mismatch: max abs err = {float(jnp.max(jnp.abs(out - ref)))}")

    print("KERNEL_OK")
</pallas_src>

<mosaic_0001>
module attributes {stable_mosaic.version = 11 : i64} {
  func.func @sse_attention_kernel(%arg0: i32, %arg1: memref<8x16x256xf32, #tpu.memory_space<vmem>>, %arg2: memref<8x128xf32, #tpu.memory_space<vmem>>, %arg3: memref<512x256xbf16, #tpu.memory_space<vmem>>, %arg4: memref<8x16x256xf32, #tpu.memory_space<vmem>>) attributes {dimension_semantics = [#tpu.dimension_semantics<parallel>], iteration_bounds = array<i64: 1>, scalar_prefetch = 0 : i64, scratch_operands = 0 : i64, tpu.core_type = #tpu.core_type<tc>, window_params = [{transform_indices = @transform_0, window_bounds = array<i64: 8, 16, 256>}, {pipeline_mode = #tpu.pipeline_mode<synchronous>, transform_indices = @transform_1, window_bounds = array<i64: 8, 128>}, {pipeline_mode = #tpu.pipeline_mode<synchronous>, transform_indices = @transform_2, window_bounds = array<i64: 512, 256>}, {transform_indices = @transform_3, window_bounds = array<i64: 8, 16, 256>}]} {
    %c0 = arith.constant 0 : index
    %c0_0 = arith.constant 0 : index
    %c0_1 = arith.constant 0 : index
    %0 = vector.load %arg1[%c0, %c0_0, %c0_1] : memref<8x16x256xf32, #tpu.memory_space<vmem>>, vector<8x16x256xf32>
    %cst = arith.constant dense<0.000000e+00> : vector<8x16xf32>
    %1 = vector.multi_reduction <add>, %0, %cst [2] : vector<8x16x256xf32> to vector<8x16xf32>
    %cst_2 = arith.constant 2.560000e+02 : f32
    %2 = vector.broadcast %cst_2 : f32 to vector<8x16xf32>
    %3 = arith.divf %1, %2 : vector<8x16xf32>
    %c5 = arith.constant 5 : index
    %c0_3 = arith.constant 0 : index
    %4 = vector.load %arg2[%c5, %c0_3] : memref<8x128xf32, #tpu.memory_space<vmem>>, vector<1x16xf32>
    %c0_4 = arith.constant 0 : index
    %c0_5 = arith.constant 0 : index
    %5 = vector.load %arg2[%c0_4, %c0_5] : memref<8x128xf32, #tpu.memory_space<vmem>>, vector<1x16xf32>
    %c2 = arith.constant 2 : index
    %c0_6 = arith.constant 0 : index
    %6 = vector.load %arg2[%c2, %c0_6] : memref<8x128xf32, #tpu.memory_space<vmem>>, vector<1x1xf32>
    %7 = vector.broadcast %5 : vector<1x16xf32> to vector<8x16xf32>
    %8 = arith.mulf %3, %7 : vector<8x16xf32>
    %cst_7 = arith.constant dense<0.000000e+00> : vector<8xf32>
    %9 = vector.multi_reduction <add>, %8, %cst_7 [1] : vector<8x16xf32> to vector<8xf32>
    %10 = vector.shape_cast %9 : vector<8xf32> to vector<8x1xf32>
    %11 = vector.broadcast %6 : vector<1x1xf32> to vector<8x1xf32>
    %12 = arith.addf %10, %11 : vector<8x1xf32>
    %cst_8 = arith.constant 0.000000e+00 : f32
    %13 = vector.broadcast %cst_8 : f32 to vector<8x1xf32>
    %14 = arith.maximumf %12, %13 : vector<8x1xf32>
    %c3 = arith.constant 3 : index
    %c0_9 = arith.constant 0 : index
    %15 = vector.load %arg2[%c3, %c0_9] : memref<8x128xf32, #tpu.memory_space<vmem>>, vector<1x16xf32>
    %16 = vector.broadcast %14 : vector<8x1xf32> to vector<8x16xf32>
    %17 = vector.broadcast %15 : vector<1x16xf32> to vector<8x16xf32>
    %18 = arith.mulf %16, %17 : vector<8x16xf32>
    %19 = vector.broadcast %4 : vector<1x16xf32> to vector<8x16xf32>
    %20 = arith.addf %19, %18 : vector<8x16xf32>
    %c1 = arith.constant 1 : index
    %c0_10 = arith.constant 0 : index
    %21 = vector.load %arg2[%c1, %c0_10] : memref<8x128xf32, #tpu.memory_space<vmem>>, vector<1x16xf32>
    %c2_11 = arith.constant 2 : index
    %c1_12 = arith.constant 1 : index
    %22 = vector.load %arg2[%c2_11, %c1_12] : memref<8x128xf32, #tpu.memory_space<vmem>>, vector<1x1xf32>
    %23 = vector.broadcast %21 : vector<1x16xf32> to vector<8x16xf32>
    %24 = arith.mulf %3, %23 : vector<8x16xf32>
    %cst_13 = arith.constant dense<0.000000e+00> : vector<8xf32>
    %25 = vector.multi_reduction <add>, %24, %cst_13 [1] : vector<8x16xf32> to vector<8xf32>
    %26 = vector.shape_cast %25 : vector<8xf32> to vector<8x1xf32>
    %27 = vector.broadcast %22 : vector<1x1xf32> to vector<8x1xf32>
    %28 = arith.addf %26, %27 : vector<8x1xf32>
    %cst_14 = arith.constant 0.000000e+00 : f32
    %29 = vector.broadcast %cst_14 : f32 to vector<8x1xf32>
    %30 = arith.maximumf %28, %29 : vector<8x1xf32>
    %c4 = arith.constant 4 : index
    %c0_15 = arith.constant 0 : index
    %31 = vector.load %arg2[%c4, %c0_15] : memref<8x128xf32, #tpu.memory_space<vmem>>, vector<1x16xf32>
    %32 = vector.broadcast %30 : vector<8x1xf32> to vector<8x16xf32>
    %33 = vector.broadcast %31 : vector<1x16xf32> to vector<8x16xf32>
    %34 = arith.mulf %32, %33 : vector<8x16xf32>
    %35 = arith.addf %20, %34 : vector<8x16xf32>
    %cst_16 = arith.constant 0.000000e+00 : f32
    %36 = vector.broadcast %cst_16 : f32 to vector<8x16xf32>
    %37 = arith.subf %36, %35 : vector<8x16xf32>
    %38 = math.exp %37 : vector<8x16xf32>
    %cst_17 = arith.constant 1.000000e+00 : f32
    %39 = vector.broadcast %cst_17 : f32 to vector<8x16xf32>
    %40 = arith.addf %39, %38 : vector<8x16xf32>
    %cst_18 = arith.constant 1.000000e+00 : f32
    %41 = vector.broadcast %cst_18 : f32 to vector<8x16xf32>
    %42 = arith.divf %41, %40 : vector<8x16xf32>
    %43 = vector.shape_cast %42 : vector<8x16xf32> to vector<8x16x1xf32>
    %44 = vector.broadcast %43 : vector<8x16x1xf32> to vector<8x16x256xf32>
    %45 = arith.mulf %0, %44 : vector<8x16x256xf32>
    %46 = arith.mulf %45, %0 : vector<8x16x256xf32>
    %cst_19 = arith.constant dense<0.000000e+00> : vector<8x256xf32>
    %47 = vector.multi_reduction <add>, %46, %cst_19 [1] : vector<8x16x256xf32> to vector<8x256xf32>
    %cst_20 = arith.constant 1.600000e+01 : f32
    %48 = vector.broadcast %cst_20 : f32 to vector<8x256xf32>
    %49 = arith.divf %47, %48 : vector<8x256xf32>
    %cst_21 = arith.constant dense<0xFF800000> : vector<8x256xf32>
    %50 = vector.multi_reduction <maximumf>, %46, %cst_21 [1] : vector<8x16x256xf32> to vector<8x256xf32>
    %51 = tpu.concatenate %49, %50 in 1 : vector<8x256xf32>, vector<8x256xf32> -> vector<8x512xf32>
    %52 = arith.truncf %51 : vector<8x512xf32> to vector<8x512xbf16>
    %c0_22 = arith.constant 0 : index
    %c0_23 = arith.constant 0 : index
    %53 = vector.load %arg3[%c0_22, %c0_23] : memref<512x256xbf16, #tpu.memory_space<vmem>>, vector<512x256xbf16>
    %cst_24 = arith.constant dense<0.000000e+00> : vector<8x256xf32>
    %54 = tpu.matmul %52, %53, %cst_24 {dimension_numbers = #tpu.dot_dimension_numbers<[1], [0], [0], [1], [0, 0, 1, 1], [], []>} : vector<8x512xbf16>, vector<512x256xbf16>, vector<8x256xf32> -> vector<8x256xf32>
    %cst_25 = arith.constant 0.000000e+00 : f32
    %55 = vector.broadcast %cst_25 : f32 to vector<8x256xf32>
    %56 = arith.subf %55, %54 : vector<8x256xf32>
    %57 = math.exp %56 : vector<8x256xf32>
    %cst_26 = arith.constant 1.000000e+00 : f32
    %58 = vector.broadcast %cst_26 : f32 to vector<8x256xf32>
    %59 = arith.addf %58, %57 : vector<8x256xf32>
    %cst_27 = arith.constant 1.000000e+00 : f32
    %60 = vector.broadcast %cst_27 : f32 to vector<8x256xf32>
    %61 = arith.divf %60, %59 : vector<8x256xf32>
    %62 = vector.shape_cast %61 : vector<8x256xf32> to vector<8x1x256xf32>
    %63 = vector.broadcast %62 : vector<8x1x256xf32> to vector<8x16x256xf32>
    %64 = arith.mulf %46, %63 : vector<8x16x256xf32>
    %c0_28 = arith.constant 0 : index
    %c0_29 = arith.constant 0 : index
    %c0_30 = arith.constant 0 : index
    %65 = vector.load %arg4[%c0_28, %c0_29, %c0_30] : memref<8x16x256xf32, #tpu.memory_space<vmem>>, vector<8x16x256xf32>
    tpu.vector_store %arg4[%c0_28, %c0_29, %c0_30], %64 {strides = array<i32>} : memref<8x16x256xf32, #tpu.memory_space<vmem>>, vector<8x16x256xf32>,
    return
  }
  func.func @transform_0(%arg0: i32) -> (i32, i32, i32) {
    %c0_i32 = arith.constant 0 : i32
    %c0_i32_0 = arith.constant 0 : i32
    %c0_i32_1 = arith.constant 0 : i32
    return %arg0, %c0_i32, %c0_i32_0 : i32, i32, i32
  }
  func.func @transform_1(%arg0: i32) -> (i32, i32) {
    %c0_i32 = arith.constant 0 : i32
    %c0_i32_0 = arith.constant 0 : i32
    %c0_i32_1 = arith.constant 0 : i32
    return %c0_i32, %c0_i32_0 : i32, i32
  }
  func.func @transform_2(%arg0: i32) -> (i32, i32) {
    %c0_i32 = arith.constant 0 : i32
    %c0_i32_0 = arith.constant 0 : i32
    %c0_i32_1 = arith.constant 0 : i32
    return %c0_i32, %c0_i32_0 : i32, i32
  }
  func.func @transform_3(%arg0: i32) -> (i32, i32, i32) {
    %c0_i32 = arith.constant 0 : i32
    %c0_i32_0 = arith.constant 0 : i32
    %c0_i32_1 = arith.constant 0 : i32
    return %arg0, %c0_i32, %c0_i32_0 : i32, i32, i32
  }
}

</mosaic_0001>

<llo_original>
// kernel: tpu_custom_call.1
$region0: #{tpu_custom_call.1}
  #allocation0 [shape = 'u32[]', space=smem, size = 0x4, offset = 0x4, fixed_abs, tag = 'smem constant byte address 0x4 - core index']
  #allocation1 [shape = 'u32[144,128]{1,0:T(1,128)}', space=vmem, size = 0x12000, scoped, tag = 'internal scratch']
  %s0 = inlined_call_operand.hbm [shape: f32[8,16,256], index: 0, kind: input, shape index: {}]
  %s1 = inlined_call_operand.hbm [shape: f32[8,128], index: 1, kind: input, shape index: {}]
  %s2 = inlined_call_operand.hbm [shape: bf16[512,256], index: 2, kind: input, shape index: {}]
  %s3 = inlined_call_operand.hbm [shape: f32[8,16,256], index: 3, kind: output, shape index: {}]
  %s4 = sld [smem:[#allocation0]]
  $region34: #{tpu_custom_call.1} parent=0
    _
  %s6 = ssub.s32 1, %s4
  %s7 = scalar_select 0, %s6, %s4
  $region1: #{tpu_custom_call.1} parent=0
    #allocation2 [shape = 'u8[131072]{0}', space=vmem, size = 0x20000, scoped, tag = 'input window, operand 0, single buffered']
    #allocation3 [shape = 's32[1]{0}', space=sflag, size = 0x4, scoped, tag = 'scoped memory for tpu_custom_call.1']
    #allocation4 [shape = 's32[1]{0}', space=sflag, size = 0x4, scoped, tag = 'scoped memory for tpu_custom_call.1']
    #allocation5 [shape = 'u8[4096]{0}', space=vmem, size = 0x1000, scoped, tag = 'input window, operand 1, single buffered']
    #allocation6 [shape = 's32[1]{0}', space=sflag, size = 0x4, scoped, tag = 'scoped memory for tpu_custom_call.1']
    #allocation7 [shape = 'u8[262144]{0}', space=vmem, size = 0x40000, scoped, tag = 'input window, operand 2, single buffered']
    #allocation8 [shape = 'u8[131072]{0}', space=vmem, size = 0x20000, scoped, tag = 'output window, operand 0, single buffered']
    %8 = vsyncpa [#allocation3], 0
    %9 = vsyncpa [#allocation6], 0
    %10 = vsyncpa [#allocation4], 0
    // Predicated region
    $region2: #{tpu_custom_call.1} parent=1 // pred_check
      _
    $region3: #{tpu_custom_call.1} parent=1 // pred_check_branch
      %12 = sbr.rel (0) target = $region5
    $region4: #{tpu_custom_call.1} parent=1 // pred_region
      %s14 = ssub.s32 4096, 4096
      %15 = vsyncadd [#allocation3], %s14
      %s16 = sshll.u32 [#allocation2], 4
      %s17 = int_to_ptr.vmem [resolvable:$true] %s16
      %22 = dma.hbm_to_vmem [thread:$0]  %s0, 4096, %s17, [#allocation3], 256, 256, 16
    $region5: #{tpu_custom_call.1} parent=1 // pred_fallthru
      _
    // Predicated region
    $region6: #{tpu_custom_call.1} parent=1 // pred_check
      _
    $region7: #{tpu_custom_call.1} parent=1 // pred_check_branch
      %24 = sbr.rel (0) target = $region9
    $region8: #{tpu_custom_call.1} parent=1 // pred_region
      %s26 = ssub.s32 128, 128
      %27 = vsyncadd [#allocation6], %s26
      %s29 = sshll.u32 [#allocation5], 4
      %s30 = int_to_ptr.vmem [resolvable:$true] %s29
      %32 = dma.hbm_to_vmem [thread:$0]  %s1, 128, %s30, [#allocation6]
    $region9: #{tpu_custom_call.1} parent=1 // pred_fallthru
      _
    // Predicated region
    $region10: #{tpu_custom_call.1} parent=1 // pred_check
      _
    $region11: #{tpu_custom_call.1} parent=1 // pred_check_branch
      %34 = sbr.rel (0) target = $region13
    $region12: #{tpu_custom_call.1} parent=1 // pred_region
      %s36 = ssub.s32 8192, 8192
      %37 = vsyncadd [#allocation6], %s36
      %s38 = sshll.u32 [#allocation7], 4
      %s39 = int_to_ptr.vmem [resolvable:$true] %s38
      %44 = dma.hbm_to_vmem [thread:$0]  %s2, 8192, %s39, [#allocation6], 128, 128, 8
    $region13: #{tpu_custom_call.1} parent=1 // pred_fallthru
      _
    // Predicated region
    $region14: #{tpu_custom_call.1} parent=1 // pred_check
      _
    $region15: #{tpu_custom_call.1} parent=1 // pred_check_branch
      %46 = sbr.rel (0) target = $region17
    $region16: #{tpu_custom_call.1} parent=1 // pred_region
      %47 = dma.done [#allocation3], 4096
    $region17: #{tpu_custom_call.1} parent=1 // pred_fallthru
      _
    // Predicated region
    $region18: #{tpu_custom_call.1} parent=1 // pred_check
      _
    $region19: #{tpu_custom_call.1} parent=1 // pred_check_branch
      %49 = sbr.rel (0) target = $region21
    $region20: #{tpu_custom_call.1} parent=1 // pred_region
      %50 = dma.done [#allocation6], 128
    $region21: #{tpu_custom_call.1} parent=1 // pred_fallthru
      _
    // Predicated region
    $region22: #{tpu_custom_call.1} parent=1 // pred_check
      _
    $region23: #{tpu_custom_call.1} parent=1 // pred_check_branch
      %52 = sbr.rel (0) target = $region25
    $region24: #{tpu_custom_call.1} parent=1 // pred_region
      %53 = dma.done [#allocation6], 8192
    $region25: #{tpu_custom_call.1} parent=1 // pred_fallthru
      _
    %v54 = vld [vmem:[#allocation2] sm:$0xff]
    %v55 = vld [vmem:[#allocation2 + $0x8] sm:$0xff]
    %v56 = vld [vmem:[#allocation2 + $0x10] sm:$0xff]
    %v57 = vld [vmem:[#allocation2 + $0x18] sm:$0xff]
    %v58 = vld [vmem:[#allocation2 + $0x20] sm:$0xff]
    %v59 = vld [vmem:[#allocation2 + $0x28] sm:$0xff]
    %v60 = vld [vmem:[#allocation2 + $0x30] sm:$0xff]
    %v61 = vld [vmem:[#allocation2 + $0x38] sm:$0xff]
    %v62 = vld [vmem:[#allocation2 + $0x40] sm:$0xff]
    %v63 = vld [vmem:[#allocation2 + $0x48] sm:$0xff]
    %v64 = vld [vmem:[#allocation2 + $0x50] sm:$0xff]
    %v65 = vld [vmem:[#allocation2 + $0x58] sm:$0xff]
    %v66 = vld [vmem:[#allocation2 + $0x60] sm:$0xff]
    %v67 = vld [vmem:[#allocation2 + $0x68] sm:$0xff]
    %v68 = vld [vmem:[#allocation2 + $0x70] sm:$0xff]
    %v69 = vld [vmem:[#allocation2 + $0x78] sm:$0xff]
    %v70 = vld [vmem:[#allocation2 + $0x80] sm:$0xff]
    %v71 = vld [vmem:[#allocation2 + $0x88] sm:$0xff]
    %v72 = vld [vmem:[#allocation2 + $0x90] sm:$0xff]
    %v73 = vld [vmem:[#allocation2 + $0x98] sm:$0xff]
    %v74 = vld [vmem:[#allocation2 + $0xa0] sm:$0xff]
    %v75 = vld [vmem:[#allocation2 + $0xa8] sm:$0xff]
    %v76 = vld [vmem:[#allocation2 + $0xb0] sm:$0xff]
    %v77 = vld [vmem:[#allocation2 + $0xb8] sm:$0xff]
    %v78 = vld [vmem:[#allocation2 + $0xc0] sm:$0xff]
    %v79 = vld [vmem:[#allocation2 + $0xc8] sm:$0xff]
    %v80 = vld [vmem:[#allocation2 + $0xd0] sm:$0xff]
    %v81 = vld [vmem:[#allocation2 + $0xd8] sm:$0xff]
    %v82 = vld [vmem:[#allocation2 + $0xe0] sm:$0xff]
    %v83 = vld [vmem:[#allocation2 + $0xe8] sm:$0xff]
    %v84 = vld [vmem:[#allocation2 + $0xf0] sm:$0xff]
    %v85 = vld [vmem:[#allocation2 + $0xf8] sm:$0xff]
    %v86 = vadd.f32 %v54, %v55
    %87 = vadd.xlane.f32.xlu0 %v86
    %v88 = vpop.xlane.xlu0 %87
    %v89 = vadd.f32 %v56, %v57
    %90 = vadd.xlane.f32.xlu0 %v89
    %v91 = vpop.xlane.xlu0 %90
    %v92 = vadd.f32 %v58, %v59
    %93 = vadd.xlane.f32.xlu0 %v92
    %v94 = vpop.xlane.xlu0 %93
    %v95 = vadd.f32 %v60, %v61
    %96 = vadd.xlane.f32.xlu0 %v95
    %v97 = vpop.xlane.xlu0 %96
    %v98 = vadd.f32 %v62, %v63
    %99 = vadd.xlane.f32.xlu0 %v98
    %v100 = vpop.xlane.xlu0 %99
    %v101 = vadd.f32 %v64, %v65
    %102 = vadd.xlane.f32.xlu0 %v101
    %v103 = vpop.xlane.xlu0 %102
    %v104 = vadd.f32 %v66, %v67
    %105 = vadd.xlane.f32.xlu0 %v104
    %v106 = vpop.xlane.xlu0 %105
    %v107 = vadd.f32 %v68, %v69
    %108 = vadd.xlane.f32.xlu0 %v107
    %v109 = vpop.xlane.xlu0 %108
    %v110 = vadd.f32 %v70, %v71
    %111 = vadd.xlane.f32.xlu0 %v110
    %v112 = vpop.xlane.xlu0 %111
    %v113 = vadd.f32 %v72, %v73
    %114 = vadd.xlane.f32.xlu0 %v113
    %v115 = vpop.xlane.xlu0 %114
    %v116 = vadd.f32 %v74, %v75
    %117 = vadd.xlane.f32.xlu0 %v116
    %v118 = vpop.xlane.xlu0 %117
    %v119 = vadd.f32 %v76, %v77
    %120 = vadd.xlane.f32.xlu0 %v119
    %v121 = vpop.xlane.xlu0 %120
    %v122 = vadd.f32 %v78, %v79
    %123 = vadd.xlane.f32.xlu0 %v122
    %v124 = vpop.xlane.xlu0 %123
    %v125 = vadd.f32 %v80, %v81
    %126 = vadd.xlane.f32.xlu0 %v125
    %v127 = vpop.xlane.xlu0 %126
    %v128 = vadd.f32 %v82, %v83
    %129 = vadd.xlane.f32.xlu0 %v128
    %v130 = vpop.xlane.xlu0 %129
    %v131 = vadd.f32 %v84, %v85
    %132 = vadd.xlane.f32.xlu0 %v131
    %v133 = vpop.xlane.xlu0 %132
    %v134 = vrcp.pop 256.0
    %v135 = vmul.f32 %v88, %v134
    %v136 = vmul.f32 %v91, %v134
    %v137 = vmul.f32 %v94, %v134
    %v138 = vmul.f32 %v97, %v134
    %v139 = vmul.f32 %v100, %v134
    %v140 = vmul.f32 %v103, %v134
    %v141 = vmul.f32 %v106, %v134
    %v142 = vmul.f32 %v109, %v134
    %v143 = vmul.f32 %v112, %v134
    %v144 = vmul.f32 %v115, %v134
    %v145 = vmul.f32 %v118, %v134
    %v146 = vmul.f32 %v121, %v134
    %v147 = vmul.f32 %v124, %v134
    %v148 = vmul.f32 %v127, %v134
    %v149 = vmul.f32 %v130, %v134
    %v150 = vmul.f32 %v133, %v134
    %v151 = vld [vmem:[#allocation5 + $0x5] sm:$0x1]
    %v152 = vld [vmem:[#allocation5] sm:$0x1]
    %v153 = vld [vmem:[#allocation5 + $0x2] sm:$0x1]
    %v154 = vlaneseq
    %v155 = vshrl.u32 %v154, 7
    %v156 = vsub.s32 0, %v155
    %v157 = vrot.slane %v152, %v156
    %160 = vbcast.lane.b32.xlu0 %v157, 256
    %v161 = vpop.permute.xlu0 %160
    %s163 = sor.u32 256, 8
    %164 = vbcast.lane.b32.xlu0 %v157, %s163
    %v165 = vpop.permute.xlu0 %164
    %v168 = vmul.f32 %v135, %v161
    %v169 = vmul.f32 %v136, %v165
    %v170 = vmul.f32 %v137, %v161
    %v171 = vmul.f32 %v138, %v165
    %v172 = vmul.f32 %v139, %v161
    %v173 = vmul.f32 %v140, %v165
    %v174 = vmul.f32 %v141, %v161
    %v175 = vmul.f32 %v142, %v165
    %v176 = vmul.f32 %v143, %v161
    %v177 = vmul.f32 %v144, %v165
    %v178 = vmul.f32 %v145, %v161
    %v179 = vmul.f32 %v146, %v165
    %v180 = vmul.f32 %v147, %v161
    %v181 = vmul.f32 %v148, %v165
    %v182 = vmul.f32 %v149, %v161
    %v183 = vmul.f32 %v150, %v165
    %200 = vset.pattern.permute.xlu0 0
    %201 = vperm.xlu0 %200, %v168
    %v202 = vpop.permute.xlu0 %201
    %203 = vset.pattern.permute.xlu0 0
    %204 = vperm.xlu0 %203, %v169
    %v205 = vpop.permute.xlu0 %204
    %206 = vset.pattern.permute.xlu0 0
    %207 = vperm.xlu0 %206, %v170
    %v208 = vpop.permute.xlu0 %207
    %209 = vset.pattern.permute.xlu0 0
    %210 = vperm.xlu0 %209, %v171
    %v211 = vpop.permute.xlu0 %210
    %212 = vset.pattern.permute.xlu0 0
    %213 = vperm.xlu0 %212, %v172
    %v214 = vpop.permute.xlu0 %213
    %215 = vset.pattern.permute.xlu0 0
    %216 = vperm.xlu0 %215, %v173
    %v217 = vpop.permute.xlu0 %216
    %218 = vset.pattern.permute.xlu0 0
    %219 = vperm.xlu0 %218, %v174
    %v220 = vpop.permute.xlu0 %219
    %221 = vset.pattern.permute.xlu0 0
    %222 = vperm.xlu0 %221, %v175
    %v223 = vpop.permute.xlu0 %222
    %224 = vset.pattern.permute.xlu0 0
    %225 = vperm.xlu0 %224, %v176
    %v226 = vpop.permute.xlu0 %225
    %227 = vset.pattern.permute.xlu0 0
    %228 = vperm.xlu0 %227, %v177
    %v229 = vpop.permute.xlu0 %228
    %230 = vset.pattern.permute.xlu0 0
    %231 = vperm.xlu0 %230, %v178
    %v232 = vpop.permute.xlu0 %231
    %233 = vset.pattern.permute.xlu0 0
    %234 = vperm.xlu0 %233, %v179
    %v235 = vpop.permute.xlu0 %234
    %236 = vset.pattern.permute.xlu0 0
    %237 = vperm.xlu0 %236, %v180
    %v238 = vpop.permute.xlu0 %237
    %239 = vset.pattern.permute.xlu0 0
    %240 = vperm.xlu0 %239, %v181
    %v241 = vpop.permute.xlu0 %240
    %242 = vset.pattern.permute.xlu0 0
    %243 = vperm.xlu0 %242, %v182
    %v244 = vpop.permute.xlu0 %243
    %245 = vset.pattern.permute.xlu0 0
    %246 = vperm.xlu0 %245, %v183
    %v247 = vpop.permute.xlu0 %246
    %v248 = vlaneseq
    %v249 = vand.u32 %v248, 127
    %v250 = vlaneseq
    %v251 = vshrl.u32 %v250, 7
    %v252 = vsub.s32 %v249, %v251
    %v253 = vrot.slane %v202, %v252
    %v254 = vadd.s32 %v249, 4294967288
    %v255 = vlaneseq
    %v256 = vshrl.u32 %v255, 7
    %v257 = vsub.s32 %v254, %v256
    %v258 = vrot.slane %v205, %v257
    %vm259 = vcmask 130112
    %v260 = vsel %vm259, %v258, %v253
    %v261 = vlaneseq
    %v262 = vshrl.u32 %v261, 7
    %v263 = vsub.s32 %v249, %v262
    %v264 = vrot.slane %v208, %v263
    %v265 = vlaneseq
    %v266 = vshrl.u32 %v265, 7
    %v267 = vsub.s32 %v254, %v266
    %v268 = vrot.slane %v211, %v267
    %v269 = vsel %vm259, %v268, %v264
    %v270 = vlaneseq
    %v271 = vshrl.u32 %v270, 7
    %v272 = vsub.s32 %v249, %v271
    %v273 = vrot.slane %v214, %v272
    %v274 = vlaneseq
    %v275 = vshrl.u32 %v274, 7
    %v276 = vsub.s32 %v254, %v275
    %v277 = vrot.slane %v217, %v276
    %v278 = vsel %vm259, %v277, %v273
    %v279 = vlaneseq
    %v280 = vshrl.u32 %v279, 7
    %v281 = vsub.s32 %v249, %v280
    %v282 = vrot.slane %v220, %v281
    %v283 = vlaneseq
    %v284 = vshrl.u32 %v283, 7
    %v285 = vsub.s32 %v254, %v284
    %v286 = vrot.slane %v223, %v285
    %v287 = vsel %vm259, %v286, %v282
    %v288 = vlaneseq
    %v289 = vshrl.u32 %v288, 7
    %v290 = vsub.s32 %v249, %v289
    %v291 = vrot.slane %v226, %v290
    %v292 = vlaneseq
    %v293 = vshrl.u32 %v292, 7
    %v294 = vsub.s32 %v254, %v293
    %v295 = vrot.slane %v229, %v294
    %v296 = vsel %vm259, %v295, %v291
    %v297 = vlaneseq
    %v298 = vshrl.u32 %v297, 7
    %v299 = vsub.s32 %v249, %v298
    %v300 = vrot.slane %v232, %v299
    %v301 = vlaneseq
    %v302 = vshrl.u32 %v301, 7
    %v303 = vsub.s32 %v254, %v302
    %v304 = vrot.slane %v235, %v303
    %v305 = vsel %vm259, %v304, %v300
    %v306 = vlaneseq
    %v307 = vshrl.u32 %v306, 7
    %v308 = vsub.s32 %v249, %v307
    %v309 = vrot.slane %v238, %v308
    %v310 = vlaneseq
    %v311 = vshrl.u32 %v310, 7
    %v312 = vsub.s32 %v254, %v311
    %v313 = vrot.slane %v241, %v312
    %v314 = vsel %vm259, %v313, %v309
    %v315 = vlaneseq
    %v316 = vshrl.u32 %v315, 7
    %v317 = vsub.s32 %v249, %v316
    %v318 = vrot.slane %v244, %v317
    %v319 = vlaneseq
    %v320 = vshrl.u32 %v319, 7
    %v321 = vsub.s32 %v254, %v320
    %v322 = vrot.slane %v247, %v321
    %v323 = vsel %vm259, %v322, %v318
    %vm324 = vcmask 1041409
    %v325 = vsel %vm324, %v269, %v260
    %vm326 = vcmask 1042434
    %v327 = vsel %vm326, %v278, %v325
    %vm328 = vcmask 1043459
    %v329 = vsel %vm328, %v287, %v327
    %vm330 = vcmask 1044484
    %v331 = vsel %vm330, %v296, %v329
    %vm332 = vcmask 1045509
    %v333 = vsel %vm332, %v305, %v331
    %vm334 = vcmask 1046534
    %v335 = vsel %vm334, %v314, %v333
    %vm336 = vcmask 1047559
    %v337 = vsel %vm336, %v323, %v335
    %vm339 = vcmask 130048
    %v340 = vsel %vm339, %v337, 0.0
    %341 = vadd.xlane.f32.xlu0 %v340
    %v342 = vpop.xlane.xlu0 %341
    %v343 = vlaneseq
    %v344 = vshrl.u32 %v343, 7
    %v345 = vsub.s32 0, %v344
    %v346 = vrot.slane %v153, %v345
    %v347 = vadd.f32 %v342, %v346
    %v348 = vmax.f32 %v347, 0.0
    %v349 = vld [vmem:[#allocation5 + $0x3] sm:$0x1]
    %351 = vset.pattern.permute.xlu0 0
    %352 = vperm.xlu0 %351, %v348
    %v353 = vpop.permute.xlu0 %352
    %v355 = vlaneseq
    %v356 = vshrl.u32 %v355, 7
    %v357 = vsub.s32 0, %v356
    %v358 = vrot.slane %v349, %v357
    %v359 = vmul.f32 %v353, %v358
    %v360 = vlaneseq
    %v361 = vshrl.u32 %v360, 7
    %v362 = vsub.s32 0, %v361
    %v363 = vrot.slane %v151, %v362
    %v364 = vadd.f32 %v363, %v359
    %v365 = vld [vmem:[#allocation5 + $0x1] sm:$0x1]
    %v366 = vlaneseq
    %v367 = vshrl.u32 %v366, 7
    %v368 = vsub.s32 0, %v367
    %v369 = vrot.slane %v365, %v368
    %372 = vbcast.lane.b32.xlu0 %v369, 256
    %v373 = vpop.permute.xlu0 %372
    %s375 = sor.u32 256, 8
    %376 = vbcast.lane.b32.xlu0 %v369, %s375
    %v377 = vpop.permute.xlu0 %376
    %v380 = vmul.f32 %v135, %v373
    %v381 = vmul.f32 %v136, %v377
    %v382 = vmul.f32 %v137, %v373
    %v383 = vmul.f32 %v138, %v377
    %v384 = vmul.f32 %v139, %v373
    %v385 = vmul.f32 %v140, %v377
    %v386 = vmul.f32 %v141, %v373
    %v387 = vmul.f32 %v142, %v377
    %v388 = vmul.f32 %v143, %v373
    %v389 = vmul.f32 %v144, %v377
    %v390 = vmul.f32 %v145, %v373
    %v391 = vmul.f32 %v146, %v377
    %v392 = vmul.f32 %v147, %v373
    %v393 = vmul.f32 %v148, %v377
    %v394 = vmul.f32 %v149, %v373
    %v395 = vmul.f32 %v150, %v377
    %412 = vset.pattern.permute.xlu0 0
    %413 = vperm.xlu0 %412, %v380
    %v414 = vpop.permute.xlu0 %413
    %415 = vset.pattern.permute.xlu0 0
    %416 = vperm.xlu0 %415, %v381
    %v417 = vpop.permute.xlu0 %416
    %418 = vset.pattern.permute.xlu0 0
    %419 = vperm.xlu0 %418, %v382
    %v420 = vpop.permute.xlu0 %419
    %421 = vset.pattern.permute.xlu0 0
    %422 = vperm.xlu0 %421, %v383
    %v423 = vpop.permute.xlu0 %422
    %424 = vset.pattern.permute.xlu0 0
    %425 = vperm.xlu0 %424, %v384
    %v426 = vpop.permute.xlu0 %425
    %427 = vset.pattern.permute.xlu0 0
    %428 = vperm.xlu0 %427, %v385
    %v429 = vpop.permute.xlu0 %428
    %430 = vset.pattern.permute.xlu0 0
    %431 = vperm.xlu0 %430, %v386
    %v432 = vpop.permute.xlu0 %431
    %433 = vset.pattern.permute.xlu0 0
    %434 = vperm.xlu0 %433, %v387
    %v435 = vpop.permute.xlu0 %434
    %436 = vset.pattern.permute.xlu0 0
    %437 = vperm.xlu0 %436, %v388
    %v438 = vpop.permute.xlu0 %437
    %439 = vset.pattern.permute.xlu0 0
    %440 = vperm.xlu0 %439, %v389
    %v441 = vpop.permute.xlu0 %440
    %442 = vset.pattern.permute.xlu0 0
    %443 = vperm.xlu0 %442, %v390
    %v444 = vpop.permute.xlu0 %443
    %445 = vset.pattern.permute.xlu0 0
    %446 = vperm.xlu0 %445, %v391
    %v447 = vpop.permute.xlu0 %446
    %448 = vset.pattern.permute.xlu0 0
    %449 = vperm.xlu0 %448, %v392
    %v450 = vpop.permute.xlu0 %449
    %451 = vset.pattern.permute.xlu0 0
    %452 = vperm.xlu0 %451, %v393
    %v453 = vpop.permute.xlu0 %452
    %454 = vset.pattern.permute.xlu0 0
    %455 = vperm.xlu0 %454, %v394
    %v456 = vpop.permute.xlu0 %455
    %457 = vset.pattern.permute.xlu0 0
    %458 = vperm.xlu0 %457, %v395
    %v459 = vpop.permute.xlu0 %458
    %v460 = vlaneseq
    %v461 = vshrl.u32 %v460, 7
    %v462 = vsub.s32 %v249, %v461
    %v463 = vrot.slane %v414, %v462
    %v464 = vlaneseq
    %v465 = vshrl.u32 %v464, 7
    %v466 = vsub.s32 %v254, %v465
    %v467 = vrot.slane %v417, %v466
    %v468 = vsel %vm259, %v467, %v463
    %v469 = vlaneseq
    %v470 = vshrl.u32 %v469, 7
    %v471 = vsub.s32 %v249, %v470
    %v472 = vrot.slane %v420, %v471
    %v473 = vlaneseq
    %v474 = vshrl.u32 %v473, 7
    %v475 = vsub.s32 %v254, %v474
    %v476 = vrot.slane %v423, %v475
    %v477 = vsel %vm259, %v476, %v472
    %v478 = vlaneseq
    %v479 = vshrl.u32 %v478, 7
    %v480 = vsub.s32 %v249, %v479
    %v481 = vrot.slane %v426, %v480
    %v482 = vlaneseq
    %v483 = vshrl.u32 %v482, 7
    %v484 = vsub.s32 %v254, %v483
    %v485 = vrot.slane %v429, %v484
    %v486 = vsel %vm259, %v485, %v481
    %v487 = vlaneseq
    %v488 = vshrl.u32 %v487, 7
    %v489 = vsub.s32 %v249, %v488
    %v490 = vrot.slane %v432, %v489
    %v491 = vlaneseq
    %v492 = vshrl.u32 %v491, 7
    %v493 = vsub.s32 %v254, %v492
    %v494 = vrot.slane %v435, %v493
    %v495 = vsel %vm259, %v494, %v490
    %v496 = vlaneseq
    %v497 = vshrl.u32 %v496, 7
    %v498 = vsub.s32 %v249, %v497
    %v499 = vrot.slane %v438, %v498
    %v500 = vlaneseq
    %v501 = vshrl.u32 %v500, 7
    %v502 = vsub.s32 %v254, %v501
    %v503 = vrot.slane %v441, %v502
    %v504 = vsel %vm259, %v503, %v499
    %v505 = vlaneseq
    %v506 = vshrl.u32 %v505, 7
    %v507 = vsub.s32 %v249, %v506
    %v508 = vrot.slane %v444, %v507
    %v509 = vlaneseq
    %v510 = vshrl.u32 %v509, 7
    %v511 = vsub.s32 %v254, %v510
    %v512 = vrot.slane %v447, %v511
    %v513 = vsel %vm259, %v512, %v508
    %v514 = vlaneseq
    %v515 = vshrl.u32 %v514, 7
    %v516 = vsub.s32 %v249, %v515
    %v517 = vrot.slane %v450, %v516
    %v518 = vlaneseq
    %v519 = vshrl.u32 %v518, 7
    %v520 = vsub.s32 %v254, %v519
    %v521 = vrot.slane %v453, %v520
    %v522 = vsel %vm259, %v521, %v517
    %v523 = vlaneseq
    %v524 = vshrl.u32 %v523, 7
    %v525 = vsub.s32 %v249, %v524
    %v526 = vrot.slane %v456, %v525
    %v527 = vlaneseq
    %v528 = vshrl.u32 %v527, 7
    %v529 = vsub.s32 %v254, %v528
    %v530 = vrot.slane %v459, %v529
    %v531 = vsel %vm259, %v530, %v526
    %v532 = vsel %vm324, %v477, %v468
    %v533 = vsel %vm326, %v486, %v532
    %v534 = vsel %vm328, %v495, %v533
    %v535 = vsel %vm330, %v504, %v534
    %v536 = vsel %vm332, %v513, %v535
    %v537 = vsel %vm334, %v522, %v536
    %v538 = vsel %vm336, %v531, %v537
    %v540 = vsel %vm339, %v538, 0.0
    %541 = vadd.xlane.f32.xlu0 %v540
    %v542 = vpop.xlane.xlu0 %541
    %v543 = vadd.f32 %v542, %v346
    %v544 = vmax.f32 %v543, 0.0
    %v545 = vld [vmem:[#allocation5 + $0x4] sm:$0x1]
    %547 = vset.pattern.permute.xlu0 1
    %548 = vperm.xlu0 %547, %v544
    %v549 = vpop.permute.xlu0 %548
    %v551 = vlaneseq
    %v552 = vshrl.u32 %v551, 7
    %v553 = vsub.s32 0, %v552
    %v554 = vrot.slane %v545, %v553
    %v555 = vmul.f32 %v549, %v554
    %v556 = vadd.f32 %v364, %v555
    %v557 = vsub.f32 0.0, %v556
    %v558 = vmul.f32 %v557, 1.442695
    %v559 = vpow.pop %v558
    %v560 = vadd.f32 %v559, 1.0
    %v561 = vrcp.pop %v560
    %v562 = vmul.f32 1.0, %v561
    %v563 = vlaneseq
    %v564 = vshrl.u32 %v563, 7
    %v565 = vsub.s32 0, %v564
    %v566 = vrot.slane %v562, %v565
    %568 = vbcast.lane.b32.xlu0 %v566, 256
    %v569 = vpop.permute.xlu0 %568
    %s571 = sor.u32 256, 8
    %572 = vbcast.lane.b32.xlu0 %v566, %s571
    %v573 = vpop.permute.xlu0 %572
    %v574 = vlaneseq
    %v575 = vshrl.u32 %v574, 7
    %v576 = vsub.s32 1, %v575
    %v577 = vrot.slane %v562, %v576
    %579 = vbcast.lane.b32.xlu0 %v577, 256
    %v580 = vpop.permute.xlu0 %579
    %s582 = sor.u32 256, 8
    %583 = vbcast.lane.b32.xlu0 %v577, %s582
    %v584 = vpop.permute.xlu0 %583
    %v585 = vlaneseq
    %v586 = vshrl.u32 %v585, 7
    %v587 = vsub.s32 2, %v586
    %v588 = vrot.slane %v562, %v587
    %590 = vbcast.lane.b32.xlu0 %v588, 256
    %v591 = vpop.permute.xlu0 %590
    %s593 = sor.u32 256, 8
    %594 = vbcast.lane.b32.xlu0 %v588, %s593
    %v595 = vpop.permute.xlu0 %594
    %v596 = vlaneseq
    %v597 = vshrl.u32 %v596, 7
    %v598 = vsub.s32 3, %v597
    %v599 = vrot.slane %v562, %v598
    %601 = vbcast.lane.b32.xlu0 %v599, 256
    %v602 = vpop.permute.xlu0 %601
    %s604 = sor.u32 256, 8
    %605 = vbcast.lane.b32.xlu0 %v599, %s604
    %v606 = vpop.permute.xlu0 %605
    %v607 = vlaneseq
    %v608 = vshrl.u32 %v607, 7
    %v609 = vsub.s32 4, %v608
    %v610 = vrot.slane %v562, %v609
    %612 = vbcast.lane.b32.xlu0 %v610, 256
    %v613 = vpop.permute.xlu0 %612
    %s615 = sor.u32 256, 8
    %616 = vbcast.lane.b32.xlu0 %v610, %s615
    %v617 = vpop.permute.xlu0 %616
    %v618 = vlaneseq
    %v619 = vshrl.u32 %v618, 7
    %v620 = vsub.s32 5, %v619
    %v621 = vrot.slane %v562, %v620
    %623 = vbcast.lane.b32.xlu0 %v621, 256
    %v624 = vpop.permute.xlu0 %623
    %s626 = sor.u32 256, 8
    %627 = vbcast.lane.b32.xlu0 %v621, %s626
    %v628 = vpop.permute.xlu0 %627
    %v629 = vlaneseq
    %v630 = vshrl.u32 %v629, 7
    %v631 = vsub.s32 6, %v630
    %v632 = vrot.slane %v562, %v631
    %634 = vbcast.lane.b32.xlu0 %v632, 256
    %v635 = vpop.permute.xlu0 %634
    %s637 = sor.u32 256, 8
    %638 = vbcast.lane.b32.xlu0 %v632, %s637
    %v639 = vpop.permute.xlu0 %638
    %v640 = vlaneseq
    %v641 = vshrl.u32 %v640, 7
    %v642 = vsub.s32 7, %v641
    %v643 = vrot.slane %v562, %v642
    %645 = vbcast.lane.b32.xlu0 %v643, 256
    %v646 = vpop.permute.xlu0 %645
    %s648 = sor.u32 256, 8
    %649 = vbcast.lane.b32.xlu0 %v643, %s648
    %v650 = vpop.permute.xlu0 %649
    %v651 = vmul.f32 %v54, %v569
    %v652 = vmul.f32 %v55, %v569
    %v653 = vmul.f32 %v56, %v573
    %v654 = vmul.f32 %v57, %v573
    %v655 = vmul.f32 %v58, %v580
    %v656 = vmul.f32 %v59, %v580
    %v657 = vmul.f32 %v60, %v584
    %v658 = vmul.f32 %v61, %v584
    %v659 = vmul.f32 %v62, %v591
    %v660 = vmul.f32 %v63, %v591
    %v661 = vmul.f32 %v64, %v595
    %v662 = vmul.f32 %v65, %v595
    %v663 = vmul.f32 %v66, %v602
    %v664 = vmul.f32 %v67, %v602
    %v665 = vmul.f32 %v68, %v606
    %v666 = vmul.f32 %v69, %v606
    %v667 = vmul.f32 %v70, %v613
    %v668 = vmul.f32 %v71, %v613
    %v669 = vmul.f32 %v72, %v617
    %v670 = vmul.f32 %v73, %v617
    %v671 = vmul.f32 %v74, %v624
    %v672 = vmul.f32 %v75, %v624
    %v673 = vmul.f32 %v76, %v628
    %v674 = vmul.f32 %v77, %v628
    %v675 = vmul.f32 %v78, %v635
    %v676 = vmul.f32 %v79, %v635
    %v677 = vmul.f32 %v80, %v639
    %v678 = vmul.f32 %v81, %v639
    %v679 = vmul.f32 %v82, %v646
    %v680 = vmul.f32 %v83, %v646
    %v681 = vmul.f32 %v84, %v650
    %v682 = vmul.f32 %v85, %v650
    %v683 = vmul.f32 %v651, %v54
    %v684 = vmul.f32 %v652, %v55
    %v685 = vmul.f32 %v653, %v56
    %v686 = vmul.f32 %v654, %v57
    %v687 = vmul.f32 %v655, %v58
    %v688 = vmul.f32 %v656, %v59
    %v689 = vmul.f32 %v657, %v60
    %v690 = vmul.f32 %v658, %v61
    %v691 = vmul.f32 %v659, %v62
    %v692 = vmul.f32 %v660, %v63
    %v693 = vmul.f32 %v661, %v64
    %v694 = vmul.f32 %v662, %v65
    %v695 = vmul.f32 %v663, %v66
    %v696 = vmul.f32 %v664, %v67
    %v697 = vmul.f32 %v665, %v68
    %v698 = vmul.f32 %v666, %v69
    %v699 = vmul.f32 %v667, %v70
    %v700 = vmul.f32 %v668, %v71
    %v701 = vmul.f32 %v669, %v72
    %v702 = vmul.f32 %v670, %v73
    %v703 = vmul.f32 %v671, %v74
    %v704 = vmul.f32 %v672, %v75
    %v705 = vmul.f32 %v673, %v76
    %v706 = vmul.f32 %v674, %v77
    %v707 = vmul.f32 %v675, %v78
    %v708 = vmul.f32 %v676, %v79
    %v709 = vmul.f32 %v677, %v80
    %v710 = vmul.f32 %v678, %v81
    %v711 = vmul.f32 %v679, %v82
    %v712 = vmul.f32 %v680, %v83
    %v713 = vmul.f32 %v681, %v84
    %v714 = vmul.f32 %v682, %v85
    %v715 = vadd.f32 %v683, %v685
    %v716 = vrot.slane %v715, 4
    %v717 = vadd.f32 %v715, %v716
    %v718 = vrot.slane %v717, 2
    %v719 = vadd.f32 %v717, %v718
    %v720 = vrot.slane %v719, 1
    %v721 = vadd.f32 %v719, %v720
    %v722 = vadd.f32 %v684, %v686
    %v723 = vrot.slane %v722, 4
    %v724 = vadd.f32 %v722, %v723
    %v725 = vrot.slane %v724, 2
    %v726 = vadd.f32 %v724, %v725
    %v727 = vrot.slane %v726, 1
    %v728 = vadd.f32 %v726, %v727
    %v729 = vadd.f32 %v687, %v689
    %v730 = vrot.slane %v729, 4
    %v731 = vadd.f32 %v729, %v730
    %v732 = vrot.slane %v731, 2
    %v733 = vadd.f32 %v731, %v732
    %v734 = vrot.slane %v733, 1
    %v735 = vadd.f32 %v733, %v734
    %v736 = vadd.f32 %v688, %v690
    %v737 = vrot.slane %v736, 4
    %v738 = vadd.f32 %v736, %v737
    %v739 = vrot.slane %v738, 2
    %v740 = vadd.f32 %v738, %v739
    %v741 = vrot.slane %v740, 1
    %v742 = vadd.f32 %v740, %v741
    %v743 = vadd.f32 %v691, %v693
    %v744 = vrot.slane %v743, 4
    %v745 = vadd.f32 %v743, %v744
    %v746 = vrot.slane %v745, 2
    %v747 = vadd.f32 %v745, %v746
    %v748 = vrot.slane %v747, 1
    %v749 = vadd.f32 %v747, %v748
    %v750 = vadd.f32 %v692, %v694
    %v751 = vrot.slane %v750, 4
    %v752 = vadd.f32 %v750, %v751
    %v753 = vrot.slane %v752, 2
    %v754 = vadd.f32 %v752, %v753
    %v755 = vrot.slane %v754, 1
    %v756 = vadd.f32 %v754, %v755
    %v757 = vadd.f32 %v695, %v697
    %v758 = vrot.slane %v757, 4
    %v759 = vadd.f32 %v757, %v758
    %v760 = vrot.slane %v759, 2
    %v761 = vadd.f32 %v759, %v760
    %v762 = vrot.slane %v761, 1
    %v763 = vadd.f32 %v761, %v762
    %v764 = vadd.f32 %v696, %v698
    %v765 = vrot.slane %v764, 4
    %v766 = vadd.f32 %v764, %v765
    %v767 = vrot.slane %v766, 2
    %v768 = vadd.f32 %v766, %v767
    %v769 = vrot.slane %v768, 1
    %v770 = vadd.f32 %v768, %v769
    %v771 = vadd.f32 %v699, %v701
    %v772 = vrot.slane %v771, 4
    %v773 = vadd.f32 %v771, %v772
    %v774 = vrot.slane %v773, 2
    %v775 = vadd.f32 %v773, %v774
    %v776 = vrot.slane %v775, 1
    %v777 = vadd.f32 %v775, %v776
    %v778 = vadd.f32 %v700, %v702
    %v779 = vrot.slane %v778, 4
    %v780 = vadd.f32 %v778, %v779
    %v781 = vrot.slane %v780, 2
    %v782 = vadd.f32 %v780, %v781
    %v783 = vrot.slane %v782, 1
    %v784 = vadd.f32 %v782, %v783
    %v785 = vadd.f32 %v703, %v705
    %v786 = vrot.slane %v785, 4
    %v787 = vadd.f32 %v785, %v786
    %v788 = vrot.slane %v787, 2
    %v789 = vadd.f32 %v787, %v788
    %v790 = vrot.slane %v789, 1
    %v791 = vadd.f32 %v789, %v790
    %v792 = vadd.f32 %v704, %v706
    %v793 = vrot.slane %v792, 4
    %v794 = vadd.f32 %v792, %v793
    %v795 = vrot.slane %v794, 2
    %v796 = vadd.f32 %v794, %v795
    %v797 = vrot.slane %v796, 1
    %v798 = vadd.f32 %v796, %v797
    %v799 = vadd.f32 %v707, %v709
    %v800 = vrot.slane %v799, 4
    %v801 = vadd.f32 %v799, %v800
    %v802 = vrot.slane %v801, 2
    %v803 = vadd.f32 %v801, %v802
    %v804 = vrot.slane %v803, 1
    %v805 = vadd.f32 %v803, %v804
    %v806 = vadd.f32 %v708, %v710
    %v807 = vrot.slane %v806, 4
    %v808 = vadd.f32 %v806, %v807
    %v809 = vrot.slane %v808, 2
    %v810 = vadd.f32 %v808, %v809
    %v811 = vrot.slane %v810, 1
    %v812 = vadd.f32 %v810, %v811
    %v813 = vadd.f32 %v711, %v713
    %v814 = vrot.slane %v813, 4
    %v815 = vadd.f32 %v813, %v814
    %v816 = vrot.slane %v815, 2
    %v817 = vadd.f32 %v815, %v816
    %v818 = vrot.slane %v817, 1
    %v819 = vadd.f32 %v817, %v818
    %v820 = vadd.f32 %v712, %v714
    %v821 = vrot.slane %v820, 4
    %v822 = vadd.f32 %v820, %v821
    %v823 = vrot.slane %v822, 2
    %v824 = vadd.f32 %v822, %v823
    %v825 = vrot.slane %v824, 1
    %v826 = vadd.f32 %v824, %v825
    %v827 = vrcp.pop 16.0
    %v828 = vmul.f32 %v721, %v827
    %v829 = vmul.f32 %v728, %v827
    %v830 = vmul.f32 %v735, %v827
    %v831 = vmul.f32 %v742, %v827
    %v832 = vmul.f32 %v749, %v827
    %v833 = vmul.f32 %v756, %v827
    %v834 = vmul.f32 %v763, %v827
    %v835 = vmul.f32 %v770, %v827
    %v836 = vmul.f32 %v777, %v827
    %v837 = vmul.f32 %v784, %v827
    %v838 = vmul.f32 %v791, %v827
    %v839 = vmul.f32 %v798, %v827
    %v840 = vmul.f32 %v805, %v827
    %v841 = vmul.f32 %v812, %v827
    %v842 = vmul.f32 %v819, %v827
    %v843 = vmul.f32 %v826, %v827
    %v844 = vmax.f32 %v683, %v685
    %v845 = vrot.slane %v844, 4
    %v846 = vmax.f32 %v844, %v845
    %v847 = vrot.slane %v846, 2
    %v848 = vmax.f32 %v846, %v847
    %v849 = vrot.slane %v848, 1
    %v850 = vmax.f32 %v848, %v849
    %v851 = vmax.f32 %v684, %v686
    %v852 = vrot.slane %v851, 4
    %v853 = vmax.f32 %v851, %v852
    %v854 = vrot.slane %v853, 2
    %v855 = vmax.f32 %v853, %v854
    %v856 = vrot.slane %v855, 1
    %v857 = vmax.f32 %v855, %v856
    %v858 = vmax.f32 %v687, %v689
    %v859 = vrot.slane %v858, 4
    %v860 = vmax.f32 %v858, %v859
    %v861 = vrot.slane %v860, 2
    %v862 = vmax.f32 %v860, %v861
    %v863 = vrot.slane %v862, 1
    %v864 = vmax.f32 %v862, %v863
    %v865 = vmax.f32 %v688, %v690
    %v866 = vrot.slane %v865, 4
    %v867 = vmax.f32 %v865, %v866
    %v868 = vrot.slane %v867, 2
    %v869 = vmax.f32 %v867, %v868
    %v870 = vrot.slane %v869, 1
    %v871 = vmax.f32 %v869, %v870
    %v872 = vmax.f32 %v691, %v693
    %v873 = vrot.slane %v872, 4
    %v874 = vmax.f32 %v872, %v873
    %v875 = vrot.slane %v874, 2
    %v876 = vmax.f32 %v874, %v875
    %v877 = vrot.slane %v876, 1
    %v878 = vmax.f32 %v876, %v877
    %v879 = vmax.f32 %v692, %v694
    %v880 = vrot.slane %v879, 4
    %v881 = vmax.f32 %v879, %v880
    %v882 = vrot.slane %v881, 2
    %v883 = vmax.f32 %v881, %v882
    %v884 = vrot.slane %v883, 1
    %v885 = vmax.f32 %v883, %v884
    %v886 = vmax.f32 %v695, %v697
    %v887 = vrot.slane %v886, 4
    %v888 = vmax.f32 %v886, %v887
    %v889 = vrot.slane %v888, 2
    %v890 = vmax.f32 %v888, %v889
    %v891 = vrot.slane %v890, 1
    %v892 = vmax.f32 %v890, %v891
    %v893 = vmax.f32 %v696, %v698
    %v894 = vrot.slane %v893, 4
    %v895 = vmax.f32 %v893, %v894
    %v896 = vrot.slane %v895, 2
    %v897 = vmax.f32 %v895, %v896
    %v898 = vrot.slane %v897, 1
    %v899 = vmax.f32 %v897, %v898
    %v900 = vmax.f32 %v699, %v701
    %v901 = vrot.slane %v900, 4
    %v902 = vmax.f32 %v900, %v901
    %v903 = vrot.slane %v902, 2
    %v904 = vmax.f32 %v902, %v903
    %v905 = vrot.slane %v904, 1
    %v906 = vmax.f32 %v904, %v905
    %v907 = vmax.f32 %v700, %v702
    %v908 = vrot.slane %v907, 4
    %v909 = vmax.f32 %v907, %v908
    %v910 = vrot.slane %v909, 2
    %v911 = vmax.f32 %v909, %v910
    %v912 = vrot.slane %v911, 1
    %v913 = vmax.f32 %v911, %v912
    %v914 = vmax.f32 %v703, %v705
    %v915 = vrot.slane %v914, 4
    %v916 = vmax.f32 %v914, %v915
    %v917 = vrot.slane %v916, 2
    %v918 = vmax.f32 %v916, %v917
    %v919 = vrot.slane %v918, 1
    %v920 = vmax.f32 %v918, %v919
    %v921 = vmax.f32 %v704, %v706
    %v922 = vrot.slane %v921, 4
    %v923 = vmax.f32 %v921, %v922
    %v924 = vrot.slane %v923, 2
    %v925 = vmax.f32 %v923, %v924
    %v926 = vrot.slane %v925, 1
    %v927 = vmax.f32 %v925, %v926
    %v928 = vmax.f32 %v707, %v709
    %v929 = vrot.slane %v928, 4
    %v930 = vmax.f32 %v928, %v929
    %v931 = vrot.slane %v930, 2
    %v932 = vmax.f32 %v930, %v931
    %v933 = vrot.slane %v932, 1
    %v934 = vmax.f32 %v932, %v933
    %v935 = vmax.f32 %v708, %v710
    %v936 = vrot.slane %v935, 4
    %v937 = vmax.f32 %v935, %v936
    %v938 = vrot.slane %v937, 2
    %v939 = vmax.f32 %v937, %v938
    %v940 = vrot.slane %v939, 1
    %v941 = vmax.f32 %v939, %v940
    %v942 = vmax.f32 %v711, %v713
    %v943 = vrot.slane %v942, 4
    %v944 = vmax.f32 %v942, %v943
    %v945 = vrot.slane %v944, 2
    %v946 = vmax.f32 %v944, %v945
    %v947 = vrot.slane %v946, 1
    %v948 = vmax.f32 %v946, %v947
    %v949 = vmax.f32 %v712, %v714
    %v950 = vrot.slane %v949, 4
    %v951 = vmax.f32 %v949, %v950
    %v952 = vrot.slane %v951, 2
    %v953 = vmax.f32 %v951, %v952
    %v954 = vrot.slane %v953, 1
    %v955 = vmax.f32 %v953, %v954
    %v972 = vsel %vm324, %v830, %v828
    %v973 = vsel %vm326, %v832, %v972
    %v974 = vsel %vm328, %v834, %v973
    %v975 = vsel %vm330, %v836, %v974
    %v976 = vsel %vm332, %v838, %v975
    %v977 = vsel %vm334, %v840, %v976
    %v978 = vsel %vm336, %v842, %v977
    %v979 = vsel %vm324, %v831, %v829
    %v980 = vsel %vm326, %v833, %v979
    %v981 = vsel %vm328, %v835, %v980
    %v982 = vsel %vm330, %v837, %v981
    %v983 = vsel %vm332, %v839, %v982
    %v984 = vsel %vm334, %v841, %v983
    %v985 = vsel %vm336, %v843, %v984
    %v1004 = vsel %vm324, %v864, %v850
    %v1005 = vsel %vm326, %v878, %v1004
    %v1006 = vsel %vm328, %v892, %v1005
    %v1007 = vsel %vm330, %v906, %v1006
    %v1008 = vsel %vm332, %v920, %v1007
    %v1009 = vsel %vm334, %v934, %v1008
    %v1010 = vsel %vm336, %v948, %v1009
    %v1011 = vsel %vm324, %v871, %v857
    %v1012 = vsel %vm326, %v885, %v1011
    %v1013 = vsel %vm328, %v899, %v1012
    %v1014 = vsel %vm330, %v913, %v1013
    %v1015 = vsel %vm332, %v927, %v1014
    %v1016 = vsel %vm334, %v941, %v1015
    %v1017 = vsel %vm336, %v955, %v1016
    %v1020 = vpack.c.bf16 %v978, %v978
    %v1021 = vpack.c.bf16 %v985, %v985
    %v1022 = vpack.c.bf16 %v1010, %v1010
    %v1023 = vpack.c.bf16 %v1017, %v1017
    %v1024 = vld [vmem:[#allocation7] sm:$0xff]
    %v1025 = vld [vmem:[#allocation7 + $0x8] sm:$0xff]
    %v1026 = vld [vmem:[#allocation7 + $0x10] sm:$0xff]
    %v1027 = vld [vmem:[#allocation7 + $0x18] sm:$0xff]
    %v1028 = vld [vmem:[#allocation7 + $0x20] sm:$0xff]
    %v1029 = vld [vmem:[#allocation7 + $0x28] sm:$0xff]
    %v1030 = vld [vmem:[#allocation7 + $0x30] sm:$0xff]
    %v1031 = vld [vmem:[#allocation7 + $0x38] sm:$0xff]
    %v1032 = vld [vmem:[#allocation7 + $0x40] sm:$0xff]
    %v1033 = vld [vmem:[#allocation7 + $0x48] sm:$0xff]
    %v1034 = vld [vmem:[#allocation7 + $0x50] sm:$0xff]
    %v1035 = vld [vmem:[#allocation7 + $0x58] sm:$0xff]
    %v1036 = vld [vmem:[#allocation7 + $0x60] sm:$0xff]
    %v1037 = vld [vmem:[#allocation7 + $0x68] sm:$0xff]
    %v1038 = vld [vmem:[#allocation7 + $0x70] sm:$0xff]
    %v1039 = vld [vmem:[#allocation7 + $0x78] sm:$0xff]
    %v1040 = vld [vmem:[#allocation7 + $0x80] sm:$0xff]
    %v1041 = vld [vmem:[#allocation7 + $0x88] sm:$0xff]
    %v1042 = vld [vmem:[#allocation7 + $0x90] sm:$0xff]
    %v1043 = vld [vmem:[#allocation7 + $0x98] sm:$0xff]
    %v1044 = vld [vmem:[#allocation7 + $0xa0] sm:$0xff]
    %v1045 = vld [vmem:[#allocation7 + $0xa8] sm:$0xff]
    %v1046 = vld [vmem:[#allocation7 + $0xb0] sm:$0xff]
    %v1047 = vld [vmem:[#allocation7 + $0xb8] sm:$0xff]
    %v1048 = vld [vmem:[#allocation7 + $0xc0] sm:$0xff]
    %v1049 = vld [vmem:[#allocation7 + $0xc8] sm:$0xff]
    %v1050 = vld [vmem:[#allocation7 + $0xd0] sm:$0xff]
    %v1051 = vld [vmem:[#allocation7 + $0xd8] sm:$0xff]
    %v1052 = vld [vmem:[#allocation7 + $0xe0] sm:$0xff]
    %v1053 = vld [vmem:[#allocation7 + $0xe8] sm:$0xff]
    %v1054 = vld [vmem:[#allocation7 + $0xf0] sm:$0xff]
    %v1055 = vld [vmem:[#allocation7 + $0xf8] sm:$0xff]
    %v1056 = vld [vmem:[#allocation7 + $0x100] sm:$0xff]
    %v1057 = vld [vmem:[#allocation7 + $0x108] sm:$0xff]
    %v1058 = vld [vmem:[#allocation7 + $0x110] sm:$0xff]
    %v1059 = vld [vmem:[#allocation7 + $0x118] sm:$0xff]
    %v1060 = vld [vmem:[#allocation7 + $0x120] sm:$0xff]
    %v1061 = vld [vmem:[#allocation7 + $0x128] sm:$0xff]
    %v1062 = vld [vmem:[#allocation7 + $0x130] sm:$0xff]
    %v1063 = vld [vmem:[#allocation7 + $0x138] sm:$0xff]
    %v1064 = vld [vmem:[#allocation7 + $0x140] sm:$0xff]
    %v1065 = vld [vmem:[#allocation7 + $0x148] sm:$0xff]
    %v1066 = vld [vmem:[#allocation7 + $0x150] sm:$0xff]
    %v1067 = vld [vmem:[#allocation7 + $0x158] sm:$0xff]
    %v1068 = vld [vmem:[#allocation7 + $0x160] sm:$0xff]
    %v1069 = vld [vmem:[#allocation7 + $0x168] sm:$0xff]
    %v1070 = vld [vmem:[#allocation7 + $0x170] sm:$0xff]
    %v1071 = vld [vmem:[#allocation7 + $0x178] sm:$0xff]
    %v1072 = vld [vmem:[#allocation7 + $0x180] sm:$0xff]
    %v1073 = vld [vmem:[#allocation7 + $0x188] sm:$0xff]
    %v1074 = vld [vmem:[#allocation7 + $0x190] sm:$0xff]
    %v1075 = vld [vmem:[#allocation7 + $0x198] sm:$0xff]
    %v1076 = vld [vmem:[#allocation7 + $0x1a0] sm:$0xff]
    %v1077 = vld [vmem:[#allocation7 + $0x1a8] sm:$0xff]
    %v1078 = vld [vmem:[#allocation7 + $0x1b0] sm:$0xff]
    %v1079 = vld [vmem:[#allocation7 + $0x1b8] sm:$0xff]
    %v1080 = vld [vmem:[#allocation7 + $0x1c0] sm:$0xff]
    %v1081 = vld [vmem:[#allocation7 + $0x1c8] sm:$0xff]
    %v1082 = vld [vmem:[#allocation7 + $0x1d0] sm:$0xff]
    %v1083 = vld [vmem:[#allocation7 + $0x1d8] sm:$0xff]
    %v1084 = vld [vmem:[#allocation7 + $0x1e0] sm:$0xff]
    %v1085 = vld [vmem:[#allocation7 + $0x1e8] sm:$0xff]
    %v1086 = vld [vmem:[#allocation7 + $0x1f0] sm:$0xff]
    %v1087 = vld [vmem:[#allocation7 + $0x1f8] sm:$0xff]
    %v1152 = vunpack.c.l.b16 %v1024
    %v1153 = vunpack.c.h.b16 %v1024
    %v1154 = vunpack.c.l.b16 %v1025
    %v1155 = vunpack.c.h.b16 %v1025
    %v1156 = vunpack.c.l.b16 %v1026
    %v1157 = vunpack.c.h.b16 %v1026
    %v1158 = vunpack.c.l.b16 %v1027
    %v1159 = vunpack.c.h.b16 %v1027
    %v1160 = vunpack.c.l.b16 %v1028
    %v1161 = vunpack.c.h.b16 %v1028
    %v1162 = vunpack.c.l.b16 %v1029
    %v1163 = vunpack.c.h.b16 %v1029
    %v1164 = vunpack.c.l.b16 %v1030
    %v1165 = vunpack.c.h.b16 %v1030
    %v1166 = vunpack.c.l.b16 %v1031
    %v1167 = vunpack.c.h.b16 %v1031
    %v1168 = vunpack.c.l.b16 %v1032
    %v1169 = vunpack.c.h.b16 %v1032
    %v1170 = vunpack.c.l.b16 %v1033
    %v1171 = vunpack.c.h.b16 %v1033
    %v1172 = vunpack.c.l.b16 %v1034
    %v1173 = vunpack.c.h.b16 %v1034
    %v1174 = vunpack.c.l.b16 %v1035
    %v1175 = vunpack.c.h.b16 %v1035
    %v1176 = vunpack.c.l.b16 %v1036
    %v1177 = vunpack.c.h.b16 %v1036
    %v1178 = vunpack.c.l.b16 %v1037
    %v1179 = vunpack.c.h.b16 %v1037
    %v1180 = vunpack.c.l.b16 %v1038
    %v1181 = vunpack.c.h.b16 %v1038
    %v1182 = vunpack.c.l.b16 %v1039
    %v1183 = vunpack.c.h.b16 %v1039
    %v1184 = vunpack.c.l.b16 %v1040
    %v1185 = vunpack.c.h.b16 %v1040
    %v1186 = vunpack.c.l.b16 %v1041
    %v1187 = vunpack.c.h.b16 %v1041
    %v1188 = vunpack.c.l.b16 %v1042
    %v1189 = vunpack.c.h.b16 %v1042
    %v1190 = vunpack.c.l.b16 %v1043
    %v1191 = vunpack.c.h.b16 %v1043
    %v1192 = vunpack.c.l.b16 %v1044
    %v1193 = vunpack.c.h.b16 %v1044
    %v1194 = vunpack.c.l.b16 %v1045
    %v1195 = vunpack.c.h.b16 %v1045
    %v1196 = vunpack.c.l.b16 %v1046
    %v1197 = vunpack.c.h.b16 %v1046
    %v1198 = vunpack.c.l.b16 %v1047
    %v1199 = vunpack.c.h.b16 %v1047
    %v1200 = vunpack.c.l.b16 %v1048
    %v1201 = vunpack.c.h.b16 %v1048
    %v1202 = vunpack.c.l.b16 %v1049
    %v1203 = vunpack.c.h.b16 %v1049
    %v1204 = vunpack.c.l.b16 %v1050
    %v1205 = vunpack.c.h.b16 %v1050
    %v1206 = vunpack.c.l.b16 %v1051
    %v1207 = vunpack.c.h.b16 %v1051
    %v1208 = vunpack.c.l.b16 %v1052
    %v1209 = vunpack.c.h.b16 %v1052
    %v1210 = vunpack.c.l.b16 %v1053
    %v1211 = vunpack.c.h.b16 %v1053
    %v1212 = vunpack.c.l.b16 %v1054
    %v1213 = vunpack.c.h.b16 %v1054
    %v1214 = vunpack.c.l.b16 %v1055
    %v1215 = vunpack.c.h.b16 %v1055
    %v1216 = vunpack.c.l.b16 %v1056
    %v1217 = vunpack.c.h.b16 %v1056
    %v1218 = vunpack.c.l.b16 %v1057
    %v1219 = vunpack.c.h.b16 %v1057
    %v1220 = vunpack.c.l.b16 %v1058
    %v1221 = vunpack.c.h.b16 %v1058
    %v1222 = vunpack.c.l.b16 %v1059
    %v1223 = vunpack.c.h.b16 %v1059
    %v1224 = vunpack.c.l.b16 %v1060
    %v1225 = vunpack.c.h.b16 %v1060
    %v1226 = vunpack.c.l.b16 %v1061
    %v1227 = vunpack.c.h.b16 %v1061
    %v1228 = vunpack.c.l.b16 %v1062
    %v1229 = vunpack.c.h.b16 %v1062
    %v1230 = vunpack.c.l.b16 %v1063
    %v1231 = vunpack.c.h.b16 %v1063
    %v1232 = vunpack.c.l.b16 %v1064
    %v1233 = vunpack.c.h.b16 %v1064
    %v1234 = vunpack.c.l.b16 %v1065
    %v1235 = vunpack.c.h.b16 %v1065
    %v1236 = vunpack.c.l.b16 %v1066
    %v1237 = vunpack.c.h.b16 %v1066
    %v1238 = vunpack.c.l.b16 %v1067
    %v1239 = vunpack.c.h.b16 %v1067
    %v1240 = vunpack.c.l.b16 %v1068
    %v1241 = vunpack.c.h.b16 %v1068
    %v1242 = vunpack.c.l.b16 %v1069
    %v1243 = vunpack.c.h.b16 %v1069
    %v1244 = vunpack.c.l.b16 %v1070
    %v1245 = vunpack.c.h.b16 %v1070
    %v1246 = vunpack.c.l.b16 %v1071
    %v1247 = vunpack.c.h.b16 %v1071
    %v1248 = vunpack.c.l.b16 %v1072
    %v1249 = vunpack.c.h.b16 %v1072
    %v1250 = vunpack.c.l.b16 %v1073
    %v1251 = vunpack.c.h.b16 %v1073
    %v1252 = vunpack.c.l.b16 %v1074
    %v1253 = vunpack.c.h.b16 %v1074
    %v1254 = vunpack.c.l.b16 %v1075
    %v1255 = vunpack.c.h.b16 %v1075
    %v1256 = vunpack.c.l.b16 %v1076
    %v1257 = vunpack.c.h.b16 %v1076
    %v1258 = vunpack.c.l.b16 %v1077
    %v1259 = vunpack.c.h.b16 %v1077
    %v1260 = vunpack.c.l.b16 %v1078
    %v1261 = vunpack.c.h.b16 %v1078
    %v1262 = vunpack.c.l.b16 %v1079
    %v1263 = vunpack.c.h.b16 %v1079
    %v1264 = vunpack.c.l.b16 %v1080
    %v1265 = vunpack.c.h.b16 %v1080
    %v1266 = vunpack.c.l.b16 %v1081
    %v1267 = vunpack.c.h.b16 %v1081
    %v1268 = vunpack.c.l.b16 %v1082
    %v1269 = vunpack.c.h.b16 %v1082
    %v1270 = vunpack.c.l.b16 %v1083
    %v1271 = vunpack.c.h.b16 %v1083
    %v1272 = vunpack.c.l.b16 %v1084
    %v1273 = vunpack.c.h.b16 %v1084
    %v1274 = vunpack.c.l.b16 %v1085
    %v1275 = vunpack.c.h.b16 %v1085
    %v1276 = vunpack.c.l.b16 %v1086
    %v1277 = vunpack.c.h.b16 %v1086
    %v1278 = vunpack.c.l.b16 %v1087
    %v1279 = vunpack.c.h.b16 %v1087
    %v1280 = vpack.c.b16 %v1154, %v1152
    %v1281 = vpack.c.b16 %v1155, %v1153
    %v1282 = vpack.c.b16 %v1158, %v1156
    %v1283 = vpack.c.b16 %v1159, %v1157
    %v1284 = vpack.c.b16 %v1162, %v1160
    %v1285 = vpack.c.b16 %v1163, %v1161
    %v1286 = vpack.c.b16 %v1166, %v1164
    %v1287 = vpack.c.b16 %v1167, %v1165
    %v1288 = vpack.c.b16 %v1170, %v1168
    %v1289 = vpack.c.b16 %v1171, %v1169
    %v1290 = vpack.c.b16 %v1174, %v1172
    %v1291 = vpack.c.b16 %v1175, %v1173
    %v1292 = vpack.c.b16 %v1178, %v1176
    %v1293 = vpack.c.b16 %v1179, %v1177
    %v1294 = vpack.c.b16 %v1182, %v1180
    %v1295 = vpack.c.b16 %v1183, %v1181
    %v1296 = vpack.c.b16 %v1186, %v1184
    %v1297 = vpack.c.b16 %v1187, %v1185
    %v1298 = vpack.c.b16 %v1190, %v1188
    %v1299 = vpack.c.b16 %v1191, %v1189
    %v1300 = vpack.c.b16 %v1194, %v1192
    %v1301 = vpack.c.b16 %v1195, %v1193
    %v1302 = vpack.c.b16 %v1198, %v1196
    %v1303 = vpack.c.b16 %v1199, %v1197
    %v1304 = vpack.c.b16 %v1202, %v1200
    %v1305 = vpack.c.b16 %v1203, %v1201
    %v1306 = vpack.c.b16 %v1206, %v1204
    %v1307 = vpack.c.b16 %v1207, %v1205
    %v1308 = vpack.c.b16 %v1210, %v1208
    %v1309 = vpack.c.b16 %v1211, %v1209
    %v1310 = vpack.c.b16 %v1214, %v1212
    %v1311 = vpack.c.b16 %v1215, %v1213
    %v1312 = vpack.c.b16 %v1218, %v1216
    %v1313 = vpack.c.b16 %v1219, %v1217
    %v1314 = vpack.c.b16 %v1222, %v1220
    %v1315 = vpack.c.b16 %v1223, %v1221
    %v1316 = vpack.c.b16 %v1226, %v1224
    %v1317 = vpack.c.b16 %v1227, %v1225
    %v1318 = vpack.c.b16 %v1230, %v1228
    %v1319 = vpack.c.b16 %v1231, %v1229
    %v1320 = vpack.c.b16 %v1234, %v1232
    %v1321 = vpack.c.b16 %v1235, %v1233
    %v1322 = vpack.c.b16 %v1238, %v1236
    %v1323 = vpack.c.b16 %v1239, %v1237
    %v1324 = vpack.c.b16 %v1242, %v1240
    %v1325 = vpack.c.b16 %v1243, %v1241
    %v1326 = vpack.c.b16 %v1246, %v1244
    %v1327 = vpack.c.b16 %v1247, %v1245
    %v1328 = vpack.c.b16 %v1250, %v1248
    %v1329 = vpack.c.b16 %v1251, %v1249
    %v1330 = vpack.c.b16 %v1254, %v1252
    %v1331 = vpack.c.b16 %v1255, %v1253
    %v1332 = vpack.c.b16 %v1258, %v1256
    %v1333 = vpack.c.b16 %v1259, %v1257
    %v1334 = vpack.c.b16 %v1262, %v1260
    %v1335 = vpack.c.b16 %v1263, %v1261
    %v1336 = vpack.c.b16 %v1266, %v1264
    %v1337 = vpack.c.b16 %v1267, %v1265
    %v1338 = vpack.c.b16 %v1270, %v1268
    %v1339 = vpack.c.b16 %v1271, %v1269
    %v1340 = vpack.c.b16 %v1274, %v1272
    %v1341 = vpack.c.b16 %v1275, %v1273
    %v1342 = vpack.c.b16 %v1278, %v1276
    %v1343 = vpack.c.b16 %v1279, %v1277
    %1408 = vmatprep.subr.bf16.mxu0 %v1295
    %1409 = vmatpush1.bf16.msra.mxu0 %v1294
    %1410 = vmatprep.subr.bf16.mxu0 %v1293
    %1411 = vmatpush1.bf16.msra.mxu0 %v1292
    %1412 = vmatprep.subr.bf16.mxu0 %v1291
    %1413 = vmatpush1.bf16.msra.mxu0 %v1290
    %1414 = vmatprep.subr.bf16.mxu0 %v1289
    %1415 = vmatpush1.bf16.msra.mxu0 %v1288
    %1416 = vmatprep.subr.bf16.mxu0 %v1287
    %1417 = vmatpush1.bf16.msra.mxu0 %v1286
    %1418 = vmatprep.subr.bf16.mxu0 %v1285
    %1419 = vmatpush1.bf16.msra.mxu0 %v1284
    %1420 = vmatprep.subr.bf16.mxu0 %v1283
    %1421 = vmatpush1.bf16.msra.mxu0 %v1282
    %1422 = vmatprep.subr.bf16.mxu0 %v1281
    %1423 = vmatpush1.bf16.msra.mxu0 %v1280
    %1424 = vmatprep.subr.bf16.mxu0 %v1311
    %1425 = vmatpush2.bf16.msra.mxu0 %v1310
    %1426 = vmatprep.subr.bf16.mxu0 %v1309
    %1427 = vmatpush2.bf16.msra.mxu0 %v1308
    %1428 = vmatprep.subr.bf16.mxu0 %v1307
    %1429 = vmatpush2.bf16.msra.mxu0 %v1306
    %1430 = vmatprep.subr.bf16.mxu0 %v1305
    %1431 = vmatpush2.bf16.msra.mxu0 %v1304
    %1432 = vmatprep.subr.bf16.mxu0 %v1303
    %1433 = vmatpush2.bf16.msra.mxu0 %v1302
    %1434 = vmatprep.subr.bf16.mxu0 %v1301
    %1435 = vmatpush2.bf16.msra.mxu0 %v1300
    %1436 = vmatprep.subr.bf16.mxu0 %v1299
    %1437 = vmatpush2.bf16.msra.mxu0 %v1298
    %1438 = vmatprep.subr.bf16.mxu0 %v1297
    %1439 = vmatpush2.bf16.msra.mxu0 %v1296
    %1440 = vmatprep.mubr.bf16.mxu0 %v1021
    %1441 = vmatmul.mubr.bf16.gmra.mxu0 %v1020
    %v1442 = vpop.f32.mrf.mxu0
    %v1443 = vadd.f32 0.0, %v1442
    %v1444 = vpop.f32.mrf.mxu0
    %v1445 = vadd.f32 0.0, %v1444
    %v1446 = vpop.f32.mrf.mxu0
    %v1447 = vpop.f32.mrf.mxu0
    %1448 = vdwg.mxu0
    %1449 = vmatprep.subr.bf16.mxu0 %v1327
    %1450 = vmatpush1.bf16.msra.mxu0 %v1326
    %1451 = vmatprep.subr.bf16.mxu0 %v1325
    %1452 = vmatpush1.bf16.msra.mxu0 %v1324
    %1453 = vmatprep.subr.bf16.mxu0 %v1323
    %1454 = vmatpush1.bf16.msra.mxu0 %v1322
    %1455 = vmatprep.subr.bf16.mxu0 %v1321
    %1456 = vmatpush1.bf16.msra.mxu0 %v1320
    %1457 = vmatprep.subr.bf16.mxu0 %v1319
    %1458 = vmatpush1.bf16.msra.mxu0 %v1318
    %1459 = vmatprep.subr.bf16.mxu0 %v1317
    %1460 = vmatpush1.bf16.msra.mxu0 %v1316
    %1461 = vmatprep.subr.bf16.mxu0 %v1315
    %1462 = vmatpush1.bf16.msra.mxu0 %v1314
    %1463 = vmatprep.subr.bf16.mxu0 %v1313
    %1464 = vmatpush1.bf16.msra.mxu0 %v1312
    %1465 = vmatprep.subr.bf16.mxu0 %v1343
    %1466 = vmatpush2.bf16.msra.mxu0 %v1342
    %1467 = vmatprep.subr.bf16.mxu0 %v1341
    %1468 = vmatpush2.bf16.msra.mxu0 %v1340
    %1469 = vmatprep.subr.bf16.mxu0 %v1339
    %1470 = vmatpush2.bf16.msra.mxu0 %v1338
    %1471 = vmatprep.subr.bf16.mxu0 %v1337
    %1472 = vmatpush2.bf16.msra.mxu0 %v1336
    %1473 = vmatprep.subr.bf16.mxu0 %v1335
    %1474 = vmatpush2.bf16.msra.mxu0 %v1334
    %1475 = vmatprep.subr.bf16.mxu0 %v1333
    %1476 = vmatpush2.bf16.msra.mxu0 %v1332
    %1477 = vmatprep.subr.bf16.mxu0 %v1331
    %1478 = vmatpush2.bf16.msra.mxu0 %v1330
    %1479 = vmatprep.subr.bf16.mxu0 %v1329
    %1480 = vmatpush2.bf16.msra.mxu0 %v1328
    %1481 = vmatprep.mubr.bf16.mxu0 %v1023
    %1482 = vmatmul.mubr.bf16.gmra.mxu0 %v1022
    %v1483 = vpop.f32.mrf.mxu0
    %v1484 = vadd.f32 %v1443, %v1483
    %v1485 = vpop.f32.mrf.mxu0
    %v1486 = vadd.f32 %v1445, %v1485
    %v1487 = vpop.f32.mrf.mxu0
    %v1488 = vpop.f32.mrf.mxu0
    %1489 = vdwg.mxu0
    %v1490 = vsub.f32 0.0, %v1484
    %v1491 = vsub.f32 0.0, %v1486
    %v1492 = vmul.f32 %v1490, 1.442695
    %v1493 = vpow.pop %v1492
    %v1494 = vmul.f32 %v1491, 1.442695
    %v1495 = vpow.pop %v1494
    %v1496 = vadd.f32 %v1493, 1.0
    %v1497 = vadd.f32 %v1495, 1.0
    %v1498 = vrcp.pop %v1496
    %v1499 = vmul.f32 1.0, %v1498
    %v1500 = vrcp.pop %v1497
    %v1501 = vmul.f32 1.0, %v1500
    %v1504 = vcombine.low %v1499, %v1501
    %v1505 = vcombine.high %v1499, %v1501
    %v1507 = vunpack.c.l.s4 1966171168
    %v1508 = vunpack.c.0.s8 %v1507
    %v1509 = vlaneseq
    %v1510 = vshrl.u32 %v1509, 7
    %v1511 = vsub.s32 %v1508, %v1510
    %v1512 = vrot.slane %v1504, %v1511
    %v1514 = vunpack.c.l.s4 1966171168
    %v1515 = vunpack.c.0.s8 %v1514
    %v1516 = vlaneseq
    %v1517 = vshrl.u32 %v1516, 7
    %v1518 = vsub.s32 %v1515, %v1517
    %v1519 = vrot.slane %v1505, %v1518
    %v1520 = vcombine.high %v1512, %v1512
    %v1521 = vcombine.high %v1519, %v1519
    %v1523 = vunpack.c.l.s4 1966171168
    %v1524 = vunpack.c.0.s8 %v1523
    %v1525 = vlaneseq
    %v1526 = vshrl.u32 %v1525, 7
    %v1527 = vsub.s32 %v1524, %v1526
    %v1528 = vrot.slane %v1512, %v1527
    %v1530 = vunpack.c.l.s4 1966171168
    %v1531 = vunpack.c.0.s8 %v1530
    %v1532 = vlaneseq
    %v1533 = vshrl.u32 %v1532, 7
    %v1534 = vsub.s32 %v1531, %v1533
    %v1535 = vrot.slane %v1519, %v1534
    %v1537 = vunpack.c.l.s4 1966171168
    %v1538 = vunpack.c.0.s8 %v1537
    %v1539 = vlaneseq
    %v1540 = vshrl.u32 %v1539, 7
    %v1541 = vsub.s32 %v1538, %v1540
    %v1542 = vrot.slane %v1520, %v1541
    %v1544 = vunpack.c.l.s4 1966171168
    %v1545 = vunpack.c.0.s8 %v1544
    %v1546 = vlaneseq
    %v1547 = vshrl.u32 %v1546, 7
    %v1548 = vsub.s32 %v1545, %v1547
    %v1549 = vrot.slane %v1521, %v1548
    %v1550 = vcombine.high %v1528, %v1528
    %v1551 = vcombine.high %v1535, %v1535
    %v1552 = vcombine.high %v1542, %v1542
    %v1553 = vcombine.high %v1549, %v1549
    %v1554 = vlaneseq
    %v1555 = vshrl.u32 %v1554, 7
    %v1556 = vsub.s32 0, %v1555
    %v1557 = vrot.slane %v1528, %v1556
    %v1558 = vlaneseq
    %v1559 = vshrl.u32 %v1558, 7
    %v1560 = vsub.s32 1, %v1559
    %v1561 = vrot.slane %v1528, %v1560
    %v1562 = vlaneseq
    %v1563 = vshrl.u32 %v1562, 7
    %v1564 = vsub.s32 0, %v1563
    %v1565 = vrot.slane %v1542, %v1564
    %v1566 = vlaneseq
    %v1567 = vshrl.u32 %v1566, 7
    %v1568 = vsub.s32 1, %v1567
    %v1569 = vrot.slane %v1542, %v1568
    %v1570 = vlaneseq
    %v1571 = vshrl.u32 %v1570, 7
    %v1572 = vsub.s32 0, %v1571
    %v1573 = vrot.slane %v1550, %v1572
    %v1574 = vlaneseq
    %v1575 = vshrl.u32 %v1574, 7
    %v1576 = vsub.s32 1, %v1575
    %v1577 = vrot.slane %v1550, %v1576
    %v1578 = vlaneseq
    %v1579 = vshrl.u32 %v1578, 7
    %v1580 = vsub.s32 0, %v1579
    %v1581 = vrot.slane %v1552, %v1580
    %v1582 = vlaneseq
    %v1583 = vshrl.u32 %v1582, 7
    %v1584 = vsub.s32 1, %v1583
    %v1585 = vrot.slane %v1552, %v1584
    %v1586 = vlaneseq
    %v1587 = vshrl.u32 %v1586, 7
    %v1588 = vsub.s32 0, %v1587
    %v1589 = vrot.slane %v1535, %v1588
    %v1590 = vlaneseq
    %v1591 = vshrl.u32 %v1590, 7
    %v1592 = vsub.s32 1, %v1591
    %v1593 = vrot.slane %v1535, %v1592
    %v1594 = vlaneseq
    %v1595 = vshrl.u32 %v1594, 7
    %v1596 = vsub.s32 0, %v1595
    %v1597 = vrot.slane %v1549, %v1596
    %v1598 = vlaneseq
    %v1599 = vshrl.u32 %v1598, 7
    %v1600 = vsub.s32 1, %v1599
    %v1601 = vrot.slane %v1549, %v1600
    %v1602 = vlaneseq
    %v1603 = vshrl.u32 %v1602, 7
    %v1604 = vsub.s32 0, %v1603
    %v1605 = vrot.slane %v1551, %v1604
    %v1606 = vlaneseq
    %v1607 = vshrl.u32 %v1606, 7
    %v1608 = vsub.s32 1, %v1607
    %v1609 = vrot.slane %v1551, %v1608
    %v1610 = vlaneseq
    %v1611 = vshrl.u32 %v1610, 7
    %v1612 = vsub.s32 0, %v1611
    %v1613 = vrot.slane %v1553, %v1612
    %v1614 = vlaneseq
    %v1615 = vshrl.u32 %v1614, 7
    %v1616 = vsub.s32 1, %v1615
    %v1617 = vrot.slane %v1553, %v1616
    %v1634 = vmul.f32 %v683, %v1557
    %v1635 = vmul.f32 %v684, %v1561
    %v1636 = vmul.f32 %v685, %v1557
    %v1637 = vmul.f32 %v686, %v1561
    %v1638 = vmul.f32 %v687, %v1565
    %v1639 = vmul.f32 %v688, %v1569
    %v1640 = vmul.f32 %v689, %v1565
    %v1641 = vmul.f32 %v690, %v1569
    %v1642 = vmul.f32 %v691, %v1573
    %v1643 = vmul.f32 %v692, %v1577
    %v1644 = vmul.f32 %v693, %v1573
    %v1645 = vmul.f32 %v694, %v1577
    %v1646 = vmul.f32 %v695, %v1581
    %v1647 = vmul.f32 %v696, %v1585
    %v1648 = vmul.f32 %v697, %v1581
    %v1649 = vmul.f32 %v698, %v1585
    %v1650 = vmul.f32 %v699, %v1589
    %v1651 = vmul.f32 %v700, %v1593
    %v1652 = vmul.f32 %v701, %v1589
    %v1653 = vmul.f32 %v702, %v1593
    %v1654 = vmul.f32 %v703, %v1597
    %v1655 = vmul.f32 %v704, %v1601
    %v1656 = vmul.f32 %v705, %v1597
    %v1657 = vmul.f32 %v706, %v1601
    %v1658 = vmul.f32 %v707, %v1605
    %v1659 = vmul.f32 %v708, %v1609
    %v1660 = vmul.f32 %v709, %v1605
    %v1661 = vmul.f32 %v710, %v1609
    %v1662 = vmul.f32 %v711, %v1613
    %v1663 = vmul.f32 %v712, %v1617
    %v1664 = vmul.f32 %v713, %v1613
    %v1665 = vmul.f32 %v714, %v1617
    %1666 = vst [vmem:[#allocation8] sm:$0xff] %v1634
    %1667 = vst [vmem:[#allocation8 + $0x8] sm:$0xff] %v1635
    %1668 = vst [vmem:[#allocation8 + $0x10] sm:$0xff] %v1636
    %1669 = vst [vmem:[#allocation8 + $0x18] sm:$0xff] %v1637
    %1670 = vst [vmem:[#allocation8 + $0x20] sm:$0xff] %v1638
    %1671 = vst [vmem:[#allocation8 + $0x28] sm:$0xff] %v1639
    %1672 = vst [vmem:[#allocation8 + $0x30] sm:$0xff] %v1640
    %1673 = vst [vmem:[#allocation8 + $0x38] sm:$0xff] %v1641
    %1674 = vst [vmem:[#allocation8 + $0x40] sm:$0xff] %v1642
    %1675 = vst [vmem:[#allocation8 + $0x48] sm:$0xff] %v1643
    %1676 = vst [vmem:[#allocation8 + $0x50] sm:$0xff] %v1644
    %1677 = vst [vmem:[#allocation8 + $0x58] sm:$0xff] %v1645
    %1678 = vst [vmem:[#allocation8 + $0x60] sm:$0xff] %v1646
    %1679 = vst [vmem:[#allocation8 + $0x68] sm:$0xff] %v1647
    %1680 = vst [vmem:[#allocation8 + $0x70] sm:$0xff] %v1648
    %1681 = vst [vmem:[#allocation8 + $0x78] sm:$0xff] %v1649
    %1682 = vst [vmem:[#allocation8 + $0x80] sm:$0xff] %v1650
    %1683 = vst [vmem:[#allocation8 + $0x88] sm:$0xff] %v1651
    %1684 = vst [vmem:[#allocation8 + $0x90] sm:$0xff] %v1652
    %1685 = vst [vmem:[#allocation8 + $0x98] sm:$0xff] %v1653
    %1686 = vst [vmem:[#allocation8 + $0xa0] sm:$0xff] %v1654
    %1687 = vst [vmem:[#allocation8 + $0xa8] sm:$0xff] %v1655
    %1688 = vst [vmem:[#allocation8 + $0xb0] sm:$0xff] %v1656
    %1689 = vst [vmem:[#allocation8 + $0xb8] sm:$0xff] %v1657
    %1690 = vst [vmem:[#allocation8 + $0xc0] sm:$0xff] %v1658
    %1691 = vst [vmem:[#allocation8 + $0xc8] sm:$0xff] %v1659
    %1692 = vst [vmem:[#allocation8 + $0xd0] sm:$0xff] %v1660
    %1693 = vst [vmem:[#allocation8 + $0xd8] sm:$0xff] %v1661
    %1694 = vst [vmem:[#allocation8 + $0xe0] sm:$0xff] %v1662
    %1695 = vst [vmem:[#allocation8 + $0xe8] sm:$0xff] %v1663
    %1696 = vst [vmem:[#allocation8 + $0xf0] sm:$0xff] %v1664
    %1697 = vst [vmem:[#allocation8 + $0xf8] sm:$0xff] %v1665
    // Predicated region
    $region26: #{tpu_custom_call.1} parent=1 // pred_check
      _
    $region27: #{tpu_custom_call.1} parent=1 // pred_check_branch
      %1699 = sbr.rel (0) target = $region29
    $region28: #{tpu_custom_call.1} parent=1 // pred_region
      %s1701 = ssub.s32 4096, 4096
      %1702 = vsyncadd [#allocation4], %s1701
      %s1703 = sshll.u32 [#allocation8], 4
      %s1704 = int_to_ptr.vmem [resolvable:$true] %s1703
      %1709 = dma.vmem_to_hbm [thread:$0]  %s1704, 4096, %s3, [#allocation4], 256, 256, 16
    $region29: #{tpu_custom_call.1} parent=1 // pred_fallthru
      _
    // Predicated region
    $region30: #{tpu_custom_call.1} parent=1 // pred_check
      _
    $region31: #{tpu_custom_call.1} parent=1 // pred_check_branch
      %1711 = sbr.rel (0) target = $region33
    $region32: #{tpu_custom_call.1} parent=1 // pred_region
      %1712 = dma.done [#allocation4], 4096
    $region33: #{tpu_custom_call.1} parent=1 // pred_fallthru
      _
    %1713 = vsyncpa [#allocation3], 1
    %1714 = vsyncpa [#allocation6], 1
    %1715 = vsyncpa [#allocation4], 1

</llo_original>
